<compile_context>
chip_gen: v5e
topology: v5e:2x2
jax: 0.10.0
libtpu: 0.0.40
codegen_flags: <defaults>
</compile_context>

<pallas_src>
import functools
from itertools import accumulate

import jax
import jax.numpy as jnp
from jax import lax
from jax.experimental import pallas as pl
from jax.experimental.pallas import tpu as pltpu


# ----------------------------- config ---------------------------------------
class Config:
    batch_size = 2
    npratio = 4                    # -> 5 candidates per impression
    news_dim = 80                  # = num_attention_heads * user_query_vector_dim
    num_attention_heads = 20
    user_query_vector_dim = 4      # per-head dim (d_k = d_v)
    chunk_size = 4
    predict_type = "cross"
    enable_gpu = False


CFG = Config()
CW = 128                           # lane stride of one fused-projection chunk


# ----------------------------- Pallas kernel --------------------------------
def ip2_kernel(hist_ref, cand_ref, w_ref, sc_ref, out_ref,
               *, S, C, D, H, dk, bB):
    f32 = jnp.float32
    inv_sqrt_dk = 1.0 / (float(dk) ** 0.5)
    SS = S * S

    # ---- constant selector matrices built in-registers (no DMA, no int div) --
    d_i = lax.broadcasted_iota(jnp.int32, (D, H), 0)
    h_i = lax.broadcasted_iota(jnp.int32, (D, H), 1)
    head_sel = ((d_i >= h_i * dk) & (d_i < (h_i + 1) * dk)).astype(f32)      # (D,H)
    h_t = lax.broadcasted_iota(jnp.int32, (H, D), 0)
    d_t = lax.broadcasted_iota(jnp.int32, (H, D), 1)
    head_sel_t = ((d_t >= h_t * dk) & (d_t < (h_t + 1) * dk)).astype(f32)    # (H,D)

    r_i = lax.broadcasted_iota(jnp.int32, (SS, S), 0)
    c_i = lax.broadcasted_iota(jnp.int32, (SS, S), 1)
    R = ((r_i >= c_i * S) & (r_i < (c_i + 1) * S)).astype(f32)               # (SS,S) query-id repeat
    t_acc = (r_i == c_i)
    for i in range(1, S):
        t_acc = t_acc | (r_i == c_i + i * S)
    T = t_acc.astype(f32)                                                    # (SS,S) key-id tile
    i_t = lax.broadcasted_iota(jnp.int32, (S, SS), 0)
    r_t = lax.broadcasted_iota(jnp.int32, (S, SS), 1)
    RT = ((r_t >= i_t * S) & (r_t < (i_t + 1) * S)).astype(f32)              # (S,SS)

    # ---- packed weights (single slab) ---------------------------------------
    W_h = w_ref[0, :D, :]          # (D, 3*CW) [wq1 | wk2 | wv2]
    b_h = w_ref[0, D:, :]          # (1, 3*CW)
    W_e = w_ref[1, :D, :]          # (D, 3*CW) [wk1 | wv1 | wq2]
    b_e = w_ref[1, D:, :]
    A1 = w_ref[2, :D, :D]          # (D, D)  additive-attn 1, first layer
    a1b1 = w_ref[2, D:, :D]        # (1, D)
    A2 = w_ref[3, :D, :D]
    a2b1 = w_ref[3, D:, :D]
    gamma = w_ref[4, 0:1, :D]      # (1, D)
    beta = w_ref[4, 1:2, :D]
    a1w2 = w_ref[4, 2:3, :D]
    a2w2 = w_ref[4, 3:4, :D]
    whu = w_ref[4, 4:5, :D]
    whu2 = w_ref[4, 5:6, :D]
    wci = w_ref[4, 6:7, :D]
    wce = w_ref[4, 7:8, :D]

    a1b2 = sc_ref[0]
    a2b2 = sc_ref[1]
    bh = sc_ref[2]
    bc = sc_ref[3]

    def layer_norm(x):
        mu = jnp.mean(x, axis=-1, keepdims=True)
        xc = x - mu
        var = jnp.mean(xc * xc, axis=-1, keepdims=True)
        return xc * lax.rsqrt(var + 1e-5) * gamma + beta

    def mha(q, k, v, mask_rep):
        # q,k,v: (S,D); mask_rep: (SS,1). All heads handled by two "real"
        # matmuls (score contraction + head expansion); R/T/RT matmuls are
        # tiny 0/1 gathers replacing reshapes.
        q_rep = jnp.dot(R, q, preferred_element_type=f32)                    # (SS,D)
        k_rep = jnp.dot(T, k, preferred_element_type=f32)
        v_rep = jnp.dot(T, v, preferred_element_type=f32)
        scores = jnp.dot(q_rep * k_rep, head_sel,
                         preferred_element_type=f32) * inv_sqrt_dk           # (SS,H)
        e = jnp.exp(scores) * mask_rep                                       # masked keys
        denom = jnp.dot(RT, e, preferred_element_type=f32)                   # (S,H)
        inv = pl.reciprocal(denom + 1e-8, approx=True)
        attn = e * jnp.dot(R, inv, preferred_element_type=f32)               # (SS,H)
        attn_d = jnp.dot(attn, head_sel_t, preferred_element_type=f32)       # (SS,D)
        return jnp.dot(RT, attn_d * v_rep, preferred_element_type=f32)       # (S,D)

    # ---- fused & batched Q/K/V projections over all samples in the block ----
    uv_all = jnp.concatenate([hist_ref[s, 0] for s in range(bB)], axis=0)    # (bB*S, D)
    ev_all = jnp.concatenate([hist_ref[s, 1] for s in range(bB)], axis=0)
    proj_h = jnp.dot(uv_all, W_h, preferred_element_type=f32) + b_h          # (bB*S, 3*CW)
    proj_e = jnp.dot(ev_all, W_e, preferred_element_type=f32) + b_e

    # ---- per-sample cross attention + shared LayerNorm ----------------------
    h1_list, h2_list, mcol_list = [], [], []
    for s in range(bB):
        r0 = s * S
        uv = hist_ref[s, 0]                                                  # (S, D)
        ev = hist_ref[s, 1]
        mcol = hist_ref[s, 2][:, 0:1]                                        # (S, 1)
        mask_rep = jnp.dot(T, mcol, preferred_element_type=f32)              # (SS, 1)

        q1 = proj_h[r0:r0 + S, 0:D]
        k2 = proj_h[r0:r0 + S, CW:CW + D]
        v2 = proj_h[r0:r0 + S, 2 * CW:2 * CW + D]
        k1 = proj_e[r0:r0 + S, 0:D]
        v1 = proj_e[r0:r0 + S, CW:CW + D]
        q2 = proj_e[r0:r0 + S, 2 * CW:2 * CW + D]

        h1_list.append(layer_norm(mha(q1, k1, v1, mask_rep) + uv))
        h2_list.append(layer_norm(mha(q2, k2, v2, mask_rep) + ev))
        mcol_list.append(mcol)

    h1_all = jnp.concatenate(h1_list, axis=0)                                # (bB*S, D)
    h2_all = jnp.concatenate(h2_list, axis=0)

    # ---- additive attention: batched projection, per-sample pooling ---------
    e1 = jnp.tanh(jnp.dot(h1_all, A1, preferred_element_type=f32) + a1b1)
    e2 = jnp.tanh(jnp.dot(h2_all, A2, preferred_element_type=f32) + a2b1)
    logit1 = jnp.sum(e1 * a1w2, axis=-1, keepdims=True) + a1b2               # (bB*S, 1)
    logit2 = jnp.sum(e2 * a2w2, axis=-1, keepdims=True) + a2b2

    # ---- candidate gating (batched over the whole block) --------------------
    imp_all = jnp.concatenate([cand_ref[s, 0] for s in range(bB)], axis=0)   # (bB*C, D)
    ient_all = jnp.concatenate([cand_ref[s, 1] for s in range(bB)], axis=0)
    ia = jax.nn.sigmoid(jnp.sum(imp_all * wci, axis=-1, keepdims=True)
                        + jnp.sum(ient_all * wce, axis=-1, keepdims=True) + bc)
    cand_all = imp_all * ia + ient_all * (1.0 - ia)                          # (bB*C, D)

    # ---- per-sample user pooling, gating and dot-product scoring ------------
    for s in range(bB):
        r0 = s * S
        mcol = mcol_list[s]

        def pool(h_all, logit_all):
            a = jnp.exp(logit_all[r0:r0 + S, :]) * mcol
            a = a * pl.reciprocal(jnp.sum(a, axis=0, keepdims=True) + 1e-8,
                                  approx=True)
            return jnp.sum(h_all[r0:r0 + S, :] * a, axis=0, keepdims=True)   # (1, D)

        user1 = pool(h1_all, logit1)
        user2 = pool(h2_all, logit2)
        ua = jax.nn.sigmoid(jnp.sum(user1 * whu, axis=-1, keepdims=True)
                            + jnp.sum(user2 * whu2, axis=-1, keepdims=True) + bh)
        user = ua * user1 + (1.0 - ua) * user2                               # (1, D)

        c0 = s * C
        cand = cand_all[c0:c0 + C, :]                                        # (C, D)
        pred = lax.dot_general(user, cand, (((1,), (1,)), ((), ())),
                               preferred_element_type=f32)                   # (1, C)
        out_ref[s] = pred


# ----------------------------- host-side packing -----------------------------
def _pick_block_batch(B, max_bb=8):
    # biggest bB that divides B while keeping >= 2 grid steps (v7x megacore)
    if B < 2:
        return 1
    best = 1
    for cand in range(2, max_bb + 1):
        if B % cand == 0 and B // cand >= 2:
            best = cand
    return best


def _pack_weights(kern, D):
    f32 = jnp.float32
    slab = jnp.zeros((5, D + 1, 3 * CW), f32)

    def put_mat(s, sidx, chunk, mat, bias):
        c0 = chunk * CW
        s = s.at[sidx, :D, c0:c0 + D].set(mat.astype(f32))
        s = s.at[sidx, D, c0:c0 + D].set(bias.reshape(D).astype(f32))
        return s

    # fused QKV for the history(user) input: [wq1 | wk2 | wv2]
    slab = put_mat(slab, 0, 0, kern['wq1'], kern['bq1'])
    slab = put_mat(slab, 0, 1, kern['wk2'], kern['bk2'])
    slab = put_mat(slab, 0, 2, kern['wv2'], kern['bv2'])
    # fused QKV for the entity input: [wk1 | wv1 | wq2]
    slab = put_mat(slab, 1, 0, kern['wk1'], kern['bk1'])
    slab = put_mat(slab, 1, 1, kern['wv1'], kern['bv1'])
    slab = put_mat(slab, 1, 2, kern['wq2'], kern['bq2'])
    # additive-attention first layers
    slab = put_mat(slab, 2, 0, kern['a1w1'], kern['a1b1'])
    slab = put_mat(slab, 3, 0, kern['a2w1'], kern['a2b1'])
    # D-length vectors (gamma, beta, a1w2, a2w2, whu, whu2, wci, wce)
    rows = jnp.stack([kern['ln_g'].reshape(D), kern['ln_b'].reshape(D),
                      kern['a1w2'].reshape(D), kern['a2w2'].reshape(D),
                      kern['whu'].reshape(D), kern['whu2'].reshape(D),
                      kern['wci'].reshape(D), kern['wce'].reshape(D)], axis=0)
    slab = slab.at[4, 0:8, 0:D].set(rows.astype(f32))

    scalars = jnp.stack([kern['a1b2'].reshape(()), kern['a2b2'].reshape(()),
                         kern['bh'].reshape(()), kern['bc'].reshape(())]
                        ).astype(f32)                                        # (4,)
    return slab, scalars


def user_and_predict(hist_vec, hist_mask, ent_hist_vec, imp_vec, im_ent_vec, kern):
    B, S, D = hist_vec.shape
    C = imp_vec.shape[1]
    H = CFG.num_attention_heads
    dk = CFG.user_query_vector_dim

    bB = _pick_block_batch(B)
    nblk = B // bB

    mask_b = jnp.broadcast_to(hist_mask[:, :, None].astype(jnp.float32), (B, S, D))
    hist_pack = jnp.stack([hist_vec.astype(jnp.float32),
                           ent_hist_vec.astype(jnp.float32), mask_b], axis=1)  # (B,3,S,D)
    cand_pack = jnp.stack([imp_vec.astype(jnp.float32),
                           im_ent_vec.astype(jnp.float32)], axis=1)            # (B,2,C,D)
    w_slab, scalars = _pack_weights(kern, D)

    out = pl.pallas_call(
        functools.partial(ip2_kernel, S=S, C=C, D=D, H=H, dk=dk, bB=bB),
        out_shape=jax.ShapeDtypeStruct((B, 1, C), jnp.float32),
        grid=(nblk,),
        in_specs=[
            pl.BlockSpec((bB, 3, S, D), lambda b: (b, 0, 0, 0)),
            pl.BlockSpec((bB, 2, C, D), lambda b: (b, 0, 0, 0)),
            pl.BlockSpec(w_slab.shape, lambda b: (0, 0, 0)),
            pl.BlockSpec(memory_space=pltpu.MemorySpace.SMEM),
        ],
        out_specs=pl.BlockSpec((bB, 1, C), lambda b: (b, 0, 0)),
        compiler_params=pltpu.CompilerParams(dimension_semantics=("parallel",)),
    )(hist_pack, cand_pack, w_slab, scalars)
    return out[:, 0, :]                                                        # (B, C)


# ----------------------------- glue (plain JAX) ------------------------------
def standin_news_encoder(tokens, token_mask, ents, cat, enc):
    # TODO(synk): Ent_Pretrainer (BERT-based news encoder) source was not provided;
    # deterministic stand-in (masked-mean token emb + category emb -> Linear for
    # text; Linear for entities). Glue, not the Pallas hot path.
    emb = enc['tok_emb'][tokens]                                               # [N, L, E]
    m = token_mask[..., None].astype(jnp.float32)
    pooled = (emb * m).sum(axis=1) / (m.sum(axis=1) + 1e-8)                    # [N, E]
    pooled = pooled + enc['cat_emb'][cat]
    text_vec = jnp.tanh(pooled @ enc['w_text'])                                # [N, D]
    ent_vec = jnp.tanh(ents @ enc['w_ent'])                                    # [N, D]
    return text_vec, ent_vec


def chunk_news_encode(tokens, masks, group_ids, ents, cat, enc):
    max_hist_len = max(group_ids)
    B = len(group_ids)
    cs = CFG.chunk_size
    N = tokens.shape[0]
    chunk_embeddings, chunk_ents = [], []
    for s in range(0, N, cs):
        tv, ev = standin_news_encoder(tokens[s:s + cs], masks[s:s + cs],
                                      ents[s:s + cs], cat[s:s + cs], enc)
        chunk_embeddings.append(tv)
        chunk_ents.append(ev)
    chunk_embeddings = jnp.concatenate(chunk_embeddings, axis=0)
    chunk_ents = jnp.concatenate(chunk_ents, axis=0)

    D = CFG.news_dim
    reshaped_embedding = jnp.zeros((B, max_hist_len, D), jnp.float32)
    reshaped_masking = jnp.zeros((B, max_hist_len), jnp.float32)
    reshaped_ents = jnp.zeros((B, max_hist_len, D), jnp.float32)
    ids_offset = [0] + list(accumulate(group_ids))
    for i, (j, k) in enumerate(zip(ids_offset, group_ids)):
        reshaped_embedding = reshaped_embedding.at[i, max_hist_len - k:].set(chunk_embeddings[j:j + k])
        reshaped_ents = reshaped_ents.at[i, max_hist_len - k:].set(chunk_ents[j:j + k])
        reshaped_masking = reshaped_masking.at[i, max_hist_len - k:].set(1.0)
    return reshaped_embedding, reshaped_masking, reshaped_ents


def ip2_forward(data, params):
    hist_vec, hist_mask, ent_hist_vec = chunk_news_encode(
        data[0], data[2], data[4], data[6], data[10], params['enc'])
    impression_vec, im_ent_vec = standin_news_encoder(
        data[1], data[3], data[7], data[11], params['enc'])
    cur_batchsize = len(data[4])
    C = CFG.npratio + 1
    impression_vec = impression_vec.reshape(cur_batchsize, C, -1)
    im_ent_vec = im_ent_vec.reshape(cur_batchsize, C, -1)
    return user_and_predict(hist_vec, hist_mask, ent_hist_vec,
                            impression_vec, im_ent_vec, params['kern'])


# ----------------------------- params ----------------------------------------
def init_params(key):
    D = CFG.news_dim
    vocab, tok_emb_dim, ent_dim, n_cat = 50, 32, 16, 10
    names_shapes = [
        ('wq1', (D, D)), ('bq1', (1, D)), ('wk1', (D, D)), ('bk1', (1, D)),
        ('wv1', (D, D)), ('bv1', (1, D)),
        ('wq2', (D, D)), ('bq2', (1, D)), ('wk2', (D, D)), ('bk2', (1, D)),
        ('wv2', (D, D)), ('bv2', (1, D)),
        ('a1w1', (D, D)), ('a1b1', (1, D)), ('a1w2', (D, 1)), ('a1b2', (1, 1)),
        ('a2w1', (D, D)), ('a2b1', (1, D)), ('a2w2', (D, 1)), ('a2b2', (1, 1)),
        ('whu', (D, 1)), ('whu2', (D, 1)), ('bh', (1, 1)),
        ('wci', (D, 1)), ('wce', (D, 1)), ('bc', (1, 1)),
    ]
    keys = jax.random.split(key, len(names_shapes) + 4)
    kern = {n: jax.random.normal(k, s, jnp.float32) * 0.1
            for (n, s), k in zip(names_shapes, keys)}
    kern['ln_g'] = jnp.ones((1, D), jnp.float32)
    kern['ln_b'] = jnp.zeros((1, D), jnp.float32)
    enc = {
        'tok_emb': jax.random.normal(keys[-4], (vocab, tok_emb_dim), jnp.float32) * 0.1,
        'cat_emb': jax.random.normal(keys[-3], (n_cat, tok_emb_dim), jnp.float32) * 0.1,
        'w_text': jax.random.normal(keys[-2], (tok_emb_dim, D), jnp.float32) * 0.1,
        'w_ent': jax.random.normal(keys[-1], (ent_dim, D), jnp.float32) * 0.1,
    }
    return {'kern': kern, 'enc': enc}


# ----------------------------- main -------------------------------------------
if __name__ == "__main__":
    key = jax.random.PRNGKey(0)
    pkey, dkey = jax.random.split(key)
    params = init_params(pkey)

    group_ids = [3, 5]                       # history length per user (batch=2)
    n_hist = sum(group_ids)
    C = CFG.npratio + 1
    n_imp = CFG.batch_size * C
    L, ent_dim = 6, 16

    ks = jax.random.split(dkey, 8)
    hist_tokens = jax.random.randint(ks[0], (n_hist, L), 1, 50)
    imp_tokens = jax.random.randint(ks[1], (n_imp, L), 1, 50)
    hist_tok_mask = jnp.ones((n_hist, L), jnp.float32)
    imp_tok_mask = jnp.ones((n_imp, L), jnp.float32)
    hist_ents = jax.random.normal(ks[2], (n_hist, ent_dim), jnp.float32)
    imp_ents = jax.random.normal(ks[3], (n_imp, ent_dim), jnp.float32)
    hist_cat = jax.random.randint(ks[4], (n_hist,), 0, 10)
    imp_cat = jax.random.randint(ks[5], (n_imp,), 0, 10)

    data = [None] * 12
    data[0], data[1] = hist_tokens, imp_tokens
    data[2], data[3] = hist_tok_mask, imp_tok_mask
    data[4] = group_ids
    data[6], data[7] = hist_ents, imp_ents
    data[10], data[11] = hist_cat, imp_cat

    pred = ip2_forward(data, params)
    jax.block_until_ready(pred)
    assert pred.shape == (CFG.batch_size, C) and pred.dtype == jnp.float32
    print("KERNEL_OK")
</pallas_src>

<mosaic_0001>
module attributes {stable_mosaic.version = 11 : i64} {
  func.func @ip2_kernel(%arg0: i32, %arg1: memref<1x3x5x80xf32, #tpu.memory_space<vmem>>, %arg2: memref<1x2x5x80xf32, #tpu.memory_space<vmem>>, %arg3: memref<5x81x384xf32, #tpu.memory_space<vmem>>, %arg4: memref<4xf32, #tpu.memory_space<smem>>, %arg5: memref<1x1x5xf32, #tpu.memory_space<vmem>>) attributes {dimension_semantics = [#tpu.dimension_semantics<parallel>], iteration_bounds = array<i64: 2>, scalar_prefetch = 0 : i64, scratch_operands = 0 : i64, tpu.core_type = #tpu.core_type<tc>, window_params = [{transform_indices = @transform_0, window_bounds = array<i64: 1, 3, 5, 80>}, {transform_indices = @transform_1, window_bounds = array<i64: 1, 2, 5, 80>}, {pipeline_mode = #tpu.pipeline_mode<synchronous>, transform_indices = @transform_2, window_bounds = array<i64: 5, 81, 384>}, {transform_indices = @transform_3, window_bounds = array<i64: 4>}, {transform_indices = @transform_4, window_bounds = array<i64: 1, 1, 5>}]} {
    %0 = tpu.iota {dimensions = array<i32: 0>} : vector<80x20xi32>
    %1 = tpu.iota {dimensions = array<i32: 1>} : vector<80x20xi32>
    %c4_i32 = arith.constant 4 : i32
    %2 = vector.broadcast %c4_i32 : i32 to vector<80x20xi32>
    %3 = arith.muli %1, %2 : vector<80x20xi32>
    %4 = arith.cmpi sge, %0, %3 : vector<80x20xi32>
    %c1_i32 = arith.constant 1 : i32
    %5 = vector.broadcast %c1_i32 : i32 to vector<80x20xi32>
    %6 = arith.addi %1, %5 : vector<80x20xi32>
    %c4_i32_0 = arith.constant 4 : i32
    %7 = vector.broadcast %c4_i32_0 : i32 to vector<80x20xi32>
    %8 = arith.muli %6, %7 : vector<80x20xi32>
    %9 = arith.cmpi slt, %0, %8 : vector<80x20xi32>
    %10 = arith.andi %4, %9 : vector<80x20xi1>
    %11 = arith.extui %10 : vector<80x20xi1> to vector<80x20xi32>
    %12 = arith.sitofp %11 : vector<80x20xi32> to vector<80x20xf32>
    %13 = tpu.iota {dimensions = array<i32: 0>} : vector<20x80xi32>
    %14 = tpu.iota {dimensions = array<i32: 1>} : vector<20x80xi32>
    %c4_i32_1 = arith.constant 4 : i32
    %15 = vector.broadcast %c4_i32_1 : i32 to vector<20x80xi32>
    %16 = arith.muli %13, %15 : vector<20x80xi32>
    %17 = arith.cmpi sge, %14, %16 : vector<20x80xi32>
    %c1_i32_2 = arith.constant 1 : i32
    %18 = vector.broadcast %c1_i32_2 : i32 to vector<20x80xi32>
    %19 = arith.addi %13, %18 : vector<20x80xi32>
    %c4_i32_3 = arith.constant 4 : i32
    %20 = vector.broadcast %c4_i32_3 : i32 to vector<20x80xi32>
    %21 = arith.muli %19, %20 : vector<20x80xi32>
    %22 = arith.cmpi slt, %14, %21 : vector<20x80xi32>
    %23 = arith.andi %17, %22 : vector<20x80xi1>
    %24 = arith.extui %23 : vector<20x80xi1> to vector<20x80xi32>
    %25 = arith.sitofp %24 : vector<20x80xi32> to vector<20x80xf32>
    %26 = tpu.iota {dimensions = array<i32: 0>} : vector<25x5xi32>
    %27 = tpu.iota {dimensions = array<i32: 1>} : vector<25x5xi32>
    %c5_i32 = arith.constant 5 : i32
    %28 = vector.broadcast %c5_i32 : i32 to vector<25x5xi32>
    %29 = arith.muli %27, %28 : vector<25x5xi32>
    %30 = arith.cmpi sge, %26, %29 : vector<25x5xi32>
    %c1_i32_4 = arith.constant 1 : i32
    %31 = vector.broadcast %c1_i32_4 : i32 to vector<25x5xi32>
    %32 = arith.addi %27, %31 : vector<25x5xi32>
    %c5_i32_5 = arith.constant 5 : i32
    %33 = vector.broadcast %c5_i32_5 : i32 to vector<25x5xi32>
    %34 = arith.muli %32, %33 : vector<25x5xi32>
    %35 = arith.cmpi slt, %26, %34 : vector<25x5xi32>
    %36 = arith.andi %30, %35 : vector<25x5xi1>
    %37 = arith.extui %36 : vector<25x5xi1> to vector<25x5xi32>
    %38 = arith.sitofp %37 : vector<25x5xi32> to vector<25x5xf32>
    %39 = arith.cmpi eq, %26, %27 : vector<25x5xi32>
    %c5_i32_6 = arith.constant 5 : i32
    %40 = vector.broadcast %c5_i32_6 : i32 to vector<25x5xi32>
    %41 = arith.addi %27, %40 : vector<25x5xi32>
    %42 = arith.cmpi eq, %26, %41 : vector<25x5xi32>
    %43 = arith.ori %39, %42 : vector<25x5xi1>
    %c10_i32 = arith.constant 10 : i32
    %44 = vector.broadcast %c10_i32 : i32 to vector<25x5xi32>
    %45 = arith.addi %27, %44 : vector<25x5xi32>
    %46 = arith.cmpi eq, %26, %45 : vector<25x5xi32>
    %47 = arith.ori %43, %46 : vector<25x5xi1>
    %c15_i32 = arith.constant 15 : i32
    %48 = vector.broadcast %c15_i32 : i32 to vector<25x5xi32>
    %49 = arith.addi %27, %48 : vector<25x5xi32>
    %50 = arith.cmpi eq, %26, %49 : vector<25x5xi32>
    %51 = arith.ori %47, %50 : vector<25x5xi1>
    %c20_i32 = arith.constant 20 : i32
    %52 = vector.broadcast %c20_i32 : i32 to vector<25x5xi32>
    %53 = arith.addi %27, %52 : vector<25x5xi32>
    %54 = arith.cmpi eq, %26, %53 : vector<25x5xi32>
    %55 = arith.ori %51, %54 : vector<25x5xi1>
    %56 = arith.extui %55 : vector<25x5xi1> to vector<25x5xi32>
    %57 = arith.sitofp %56 : vector<25x5xi32> to vector<25x5xf32>
    %58 = tpu.iota {dimensions = array<i32: 0>} : vector<5x25xi32>
    %59 = tpu.iota {dimensions = array<i32: 1>} : vector<5x25xi32>
    %c5_i32_7 = arith.constant 5 : i32
    %60 = vector.broadcast %c5_i32_7 : i32 to vector<5x25xi32>
    %61 = arith.muli %58, %60 : vector<5x25xi32>
    %62 = arith.cmpi sge, %59, %61 : vector<5x25xi32>
    %c1_i32_8 = arith.constant 1 : i32
    %63 = vector.broadcast %c1_i32_8 : i32 to vector<5x25xi32>
    %64 = arith.addi %58, %63 : vector<5x25xi32>
    %c5_i32_9 = arith.constant 5 : i32
    %65 = vector.broadcast %c5_i32_9 : i32 to vector<5x25xi32>
    %66 = arith.muli %64, %65 : vector<5x25xi32>
    %67 = arith.cmpi slt, %59, %66 : vector<5x25xi32>
    %68 = arith.andi %62, %67 : vector<5x25xi1>
    %69 = arith.extui %68 : vector<5x25xi1> to vector<5x25xi32>
    %70 = arith.sitofp %69 : vector<5x25xi32> to vector<5x25xf32>
    %c0 = arith.constant 0 : index
    %c0_10 = arith.constant 0 : index
    %c0_11 = arith.constant 0 : index
    %71 = vector.load %arg3[%c0, %c0_10, %c0_11] : memref<5x81x384xf32, #tpu.memory_space<vmem>>, vector<1x80x384xf32>
    %72 = vector.shape_cast %71 : vector<1x80x384xf32> to vector<80x384xf32>
    %c0_12 = arith.constant 0 : index
    %c80 = arith.constant 80 : index
    %c0_13 = arith.constant 0 : index
    %73 = vector.load %arg3[%c0_12, %c80, %c0_13] : memref<5x81x384xf32, #tpu.memory_space<vmem>>, vector<1x1x384xf32>
    %74 = vector.shape_cast %73 : vector<1x1x384xf32> to vector<1x384xf32>
    %c1 = arith.constant 1 : index
    %c0_14 = arith.constant 0 : index
    %c0_15 = arith.constant 0 : index
    %75 = vector.load %arg3[%c1, %c0_14, %c0_15] : memref<5x81x384xf32, #tpu.memory_space<vmem>>, vector<1x80x384xf32>
    %76 = vector.shape_cast %75 : vector<1x80x384xf32> to vector<80x384xf32>
    %c1_16 = arith.constant 1 : index
    %c80_17 = arith.constant 80 : index
    %c0_18 = arith.constant 0 : index
    %77 = vector.load %arg3[%c1_16, %c80_17, %c0_18] : memref<5x81x384xf32, #tpu.memory_space<vmem>>, vector<1x1x384xf32>
    %78 = vector.shape_cast %77 : vector<1x1x384xf32> to vector<1x384xf32>
    %c2 = arith.constant 2 : index
    %c0_19 = arith.constant 0 : index
    %c0_20 = arith.constant 0 : index
    %79 = vector.load %arg3[%c2, %c0_19, %c0_20] : memref<5x81x384xf32, #tpu.memory_space<vmem>>, vector<1x80x80xf32>
    %80 = vector.shape_cast %79 : vector<1x80x80xf32> to vector<80x80xf32>
    %c2_21 = arith.constant 2 : index
    %c80_22 = arith.constant 80 : index
    %c0_23 = arith.constant 0 : index
    %81 = vector.load %arg3[%c2_21, %c80_22, %c0_23] : memref<5x81x384xf32, #tpu.memory_space<vmem>>, vector<1x1x80xf32>
    %82 = vector.shape_cast %81 : vector<1x1x80xf32> to vector<1x80xf32>
    %c3 = arith.constant 3 : index
    %c0_24 = arith.constant 0 : index
    %c0_25 = arith.constant 0 : index
    %83 = vector.load %arg3[%c3, %c0_24, %c0_25] : memref<5x81x384xf32, #tpu.memory_space<vmem>>, vector<1x80x80xf32>
    %84 = vector.shape_cast %83 : vector<1x80x80xf32> to vector<80x80xf32>
    %c3_26 = arith.constant 3 : index
    %c80_27 = arith.constant 80 : index
    %c0_28 = arith.constant 0 : index
    %85 = vector.load %arg3[%c3_26, %c80_27, %c0_28] : memref<5x81x384xf32, #tpu.memory_space<vmem>>, vector<1x1x80xf32>
    %86 = vector.shape_cast %85 : vector<1x1x80xf32> to vector<1x80xf32>
    %c4 = arith.constant 4 : index
    %c0_29 = arith.constant 0 : index
    %c0_30 = arith.constant 0 : index
    %87 = vector.load %arg3[%c4, %c0_29, %c0_30] : memref<5x81x384xf32, #tpu.memory_space<vmem>>, vector<1x1x80xf32>
    %88 = vector.shape_cast %87 : vector<1x1x80xf32> to vector<1x80xf32>
    %c4_31 = arith.constant 4 : index
    %c1_32 = arith.constant 1 : index
    %c0_33 = arith.constant 0 : index
    %89 = vector.load %arg3[%c4_31, %c1_32, %c0_33] : memref<5x81x384xf32, #tpu.memory_space<vmem>>, vector<1x1x80xf32>
    %90 = vector.shape_cast %89 : vector<1x1x80xf32> to vector<1x80xf32>
    %c4_34 = arith.constant 4 : index
    %c2_35 = arith.constant 2 : index
    %c0_36 = arith.constant 0 : index
    %91 = vector.load %arg3[%c4_34, %c2_35, %c0_36] : memref<5x81x384xf32, #tpu.memory_space<vmem>>, vector<1x1x80xf32>
    %92 = vector.shape_cast %91 : vector<1x1x80xf32> to vector<1x80xf32>
    %c4_37 = arith.constant 4 : index
    %c3_38 = arith.constant 3 : index
    %c0_39 = arith.constant 0 : index
    %93 = vector.load %arg3[%c4_37, %c3_38, %c0_39] : memref<5x81x384xf32, #tpu.memory_space<vmem>>, vector<1x1x80xf32>
    %94 = vector.shape_cast %93 : vector<1x1x80xf32> to vector<1x80xf32>
    %c4_40 = arith.constant 4 : index
    %c4_41 = arith.constant 4 : index
    %c0_42 = arith.constant 0 : index
    %95 = vector.load %arg3[%c4_40, %c4_41, %c0_42] : memref<5x81x384xf32, #tpu.memory_space<vmem>>, vector<1x1x80xf32>
    %96 = vector.shape_cast %95 : vector<1x1x80xf32> to vector<1x80xf32>
    %c4_43 = arith.constant 4 : index
    %c5 = arith.constant 5 : index
    %c0_44 = arith.constant 0 : index
    %97 = vector.load %arg3[%c4_43, %c5, %c0_44] : memref<5x81x384xf32, #tpu.memory_space<vmem>>, vector<1x1x80xf32>
    %98 = vector.shape_cast %97 : vector<1x1x80xf32> to vector<1x80xf32>
    %c4_45 = arith.constant 4 : index
    %c6 = arith.constant 6 : index
    %c0_46 = arith.constant 0 : index
    %99 = vector.load %arg3[%c4_45, %c6, %c0_46] : memref<5x81x384xf32, #tpu.memory_space<vmem>>, vector<1x1x80xf32>
    %100 = vector.shape_cast %99 : vector<1x1x80xf32> to vector<1x80xf32>
    %c4_47 = arith.constant 4 : index
    %c7 = arith.constant 7 : index
    %c0_48 = arith.constant 0 : index
    %101 = vector.load %arg3[%c4_47, %c7, %c0_48] : memref<5x81x384xf32, #tpu.memory_space<vmem>>, vector<1x1x80xf32>
    %102 = vector.shape_cast %101 : vector<1x1x80xf32> to vector<1x80xf32>
    %c0_49 = arith.constant 0 : index
    %103 = memref.load %arg4[%c0_49] : memref<4xf32, #tpu.memory_space<smem>>
    %c1_50 = arith.constant 1 : index
    %104 = memref.load %arg4[%c1_50] : memref<4xf32, #tpu.memory_space<smem>>
    %c2_51 = arith.constant 2 : index
    %105 = memref.load %arg4[%c2_51] : memref<4xf32, #tpu.memory_space<smem>>
    %c3_52 = arith.constant 3 : index
    %106 = memref.load %arg4[%c3_52] : memref<4xf32, #tpu.memory_space<smem>>
    %c0_53 = arith.constant 0 : index
    %c0_54 = arith.constant 0 : index
    %c0_55 = arith.constant 0 : index
    %c0_56 = arith.constant 0 : index
    %107 = vector.load %arg1[%c0_53, %c0_54, %c0_55, %c0_56] : memref<1x3x5x80xf32, #tpu.memory_space<vmem>>, vector<1x1x5x80xf32>
    %108 = vector.shape_cast %107 : vector<1x1x5x80xf32> to vector<5x80xf32>
    %c0_57 = arith.constant 0 : index
    %c1_58 = arith.constant 1 : index
    %c0_59 = arith.constant 0 : index
    %c0_60 = arith.constant 0 : index
    %109 = vector.load %arg1[%c0_57, %c1_58, %c0_59, %c0_60] : memref<1x3x5x80xf32, #tpu.memory_space<vmem>>, vector<1x1x5x80xf32>
    %110 = vector.shape_cast %109 : vector<1x1x5x80xf32> to vector<5x80xf32>
    %cst = arith.constant dense<0.000000e+00> : vector<5x384xf32>
    %111 = tpu.matmul %108, %72, %cst {dimension_numbers = #tpu.dot_dimension_numbers<[1], [0], [0], [1], [0, 0, 1, 1], [], []>} : vector<5x80xf32>, vector<80x384xf32>, vector<5x384xf32> -> vector<5x384xf32>
    %112 = vector.broadcast %74 : vector<1x384xf32> to vector<5x384xf32>
    %113 = arith.addf %111, %112 : vector<5x384xf32>
    %cst_61 = arith.constant dense<0.000000e+00> : vector<5x384xf32>
    %114 = tpu.matmul %110, %76, %cst_61 {dimension_numbers = #tpu.dot_dimension_numbers<[1], [0], [0], [1], [0, 0, 1, 1], [], []>} : vector<5x80xf32>, vector<80x384xf32>, vector<5x384xf32> -> vector<5x384xf32>
    %115 = vector.broadcast %78 : vector<1x384xf32> to vector<5x384xf32>
    %116 = arith.addf %114, %115 : vector<5x384xf32>
    %c0_62 = arith.constant 0 : index
    %c0_63 = arith.constant 0 : index
    %c0_64 = arith.constant 0 : index
    %c0_65 = arith.constant 0 : index
    %117 = vector.load %arg1[%c0_62, %c0_63, %c0_64, %c0_65] : memref<1x3x5x80xf32, #tpu.memory_space<vmem>>, vector<1x1x5x80xf32>
    %118 = vector.shape_cast %117 : vector<1x1x5x80xf32> to vector<5x80xf32>
    %c0_66 = arith.constant 0 : index
    %c1_67 = arith.constant 1 : index
    %c0_68 = arith.constant 0 : index
    %c0_69 = arith.constant 0 : index
    %119 = vector.load %arg1[%c0_66, %c1_67, %c0_68, %c0_69] : memref<1x3x5x80xf32, #tpu.memory_space<vmem>>, vector<1x1x5x80xf32>
    %120 = vector.shape_cast %119 : vector<1x1x5x80xf32> to vector<5x80xf32>
    %c0_70 = arith.constant 0 : index
    %c2_71 = arith.constant 2 : index
    %c0_72 = arith.constant 0 : index
    %c0_73 = arith.constant 0 : index
    %121 = vector.load %arg1[%c0_70, %c2_71, %c0_72, %c0_73] : memref<1x3x5x80xf32, #tpu.memory_space<vmem>>, vector<1x1x5x80xf32>
    %122 = vector.shape_cast %121 : vector<1x1x5x80xf32> to vector<5x80xf32>
    %123 = vector.extract_strided_slice %122 {offsets = [0, 0], sizes = [5, 1], strides = [1, 1]} : vector<5x80xf32> to vector<5x1xf32>
    %cst_74 = arith.constant dense<0.000000e+00> : vector<25x1xf32>
    %124 = tpu.matmul %57, %123, %cst_74 {dimension_numbers = #tpu.dot_dimension_numbers<[1], [0], [0], [1], [0, 0, 1, 1], [], []>} : vector<25x5xf32>, vector<5x1xf32>, vector<25x1xf32> -> vector<25x1xf32>
    %125 = vector.extract_strided_slice %113 {offsets = [0, 0], sizes = [5, 80], strides = [1, 1]} : vector<5x384xf32> to vector<5x80xf32>
    %126 = vector.extract_strided_slice %113 {offsets = [0, 128], sizes = [5, 80], strides = [1, 1]} : vector<5x384xf32> to vector<5x80xf32>
    %127 = vector.extract_strided_slice %113 {offsets = [0, 256], sizes = [5, 80], strides = [1, 1]} : vector<5x384xf32> to vector<5x80xf32>
    %128 = vector.extract_strided_slice %116 {offsets = [0, 0], sizes = [5, 80], strides = [1, 1]} : vector<5x384xf32> to vector<5x80xf32>
    %129 = vector.extract_strided_slice %116 {offsets = [0, 128], sizes = [5, 80], strides = [1, 1]} : vector<5x384xf32> to vector<5x80xf32>
    %130 = vector.extract_strided_slice %116 {offsets = [0, 256], sizes = [5, 80], strides = [1, 1]} : vector<5x384xf32> to vector<5x80xf32>
    %cst_75 = arith.constant dense<0.000000e+00> : vector<25x80xf32>
    %131 = tpu.matmul %38, %125, %cst_75 {dimension_numbers = #tpu.dot_dimension_numbers<[1], [0], [0], [1], [0, 0, 1, 1], [], []>} : vector<25x5xf32>, vector<5x80xf32>, vector<25x80xf32> -> vector<25x80xf32>
    %cst_76 = arith.constant dense<0.000000e+00> : vector<25x80xf32>
    %132 = tpu.matmul %57, %128, %cst_76 {dimension_numbers = #tpu.dot_dimension_numbers<[1], [0], [0], [1], [0, 0, 1, 1], [], []>} : vector<25x5xf32>, vector<5x80xf32>, vector<25x80xf32> -> vector<25x80xf32>
    %cst_77 = arith.constant dense<0.000000e+00> : vector<25x80xf32>
    %133 = tpu.matmul %57, %129, %cst_77 {dimension_numbers = #tpu.dot_dimension_numbers<[1], [0], [0], [1], [0, 0, 1, 1], [], []>} : vector<25x5xf32>, vector<5x80xf32>, vector<25x80xf32> -> vector<25x80xf32>
    %134 = arith.mulf %131, %132 : vector<25x80xf32>
    %cst_78 = arith.constant dense<0.000000e+00> : vector<25x20xf32>
    %135 = tpu.matmul %134, %12, %cst_78 {dimension_numbers = #tpu.dot_dimension_numbers<[1], [0], [0], [1], [0, 0, 1, 1], [], []>} : vector<25x80xf32>, vector<80x20xf32>, vector<25x20xf32> -> vector<25x20xf32>
    %cst_79 = arith.constant 5.000000e-01 : f32
    %136 = vector.broadcast %cst_79 : f32 to vector<25x20xf32>
    %137 = arith.mulf %135, %136 : vector<25x20xf32>
    %138 = math.exp %137 : vector<25x20xf32>
    %139 = vector.broadcast %124 : vector<25x1xf32> to vector<25x20xf32>
    %140 = arith.mulf %138, %139 : vector<25x20xf32>
    %cst_80 = arith.constant dense<0.000000e+00> : vector<5x20xf32>
    %141 = tpu.matmul %70, %140, %cst_80 {dimension_numbers = #tpu.dot_dimension_numbers<[1], [0], [0], [1], [0, 0, 1, 1], [], []>} : vector<5x25xf32>, vector<25x20xf32>, vector<5x20xf32> -> vector<5x20xf32>
    %cst_81 = arith.constant 9.99999993E-9 : f32
    %142 = vector.broadcast %cst_81 : f32 to vector<5x20xf32>
    %143 = arith.addf %141, %142 : vector<5x20xf32>
    %144 = tpu.reciprocal %143 {approx = true} : vector<5x20xf32> -> vector<5x20xf32>
    %cst_82 = arith.constant dense<0.000000e+00> : vector<25x20xf32>
    %145 = tpu.matmul %38, %144, %cst_82 {dimension_numbers = #tpu.dot_dimension_numbers<[1], [0], [0], [1], [0, 0, 1, 1], [], []>} : vector<25x5xf32>, vector<5x20xf32>, vector<25x20xf32> -> vector<25x20xf32>
    %146 = arith.mulf %140, %145 : vector<25x20xf32>
    %cst_83 = arith.constant dense<0.000000e+00> : vector<25x80xf32>
    %147 = tpu.matmul %146, %25, %cst_83 {dimension_numbers = #tpu.dot_dimension_numbers<[1], [0], [0], [1], [0, 0, 1, 1], [], []>} : vector<25x20xf32>, vector<20x80xf32>, vector<25x80xf32> -> vector<25x80xf32>
    %148 = arith.mulf %147, %133 : vector<25x80xf32>
    %cst_84 = arith.constant dense<0.000000e+00> : vector<5x80xf32>
    %149 = tpu.matmul %70, %148, %cst_84 {dimension_numbers = #tpu.dot_dimension_numbers<[1], [0], [0], [1], [0, 0, 1, 1], [], []>} : vector<5x25xf32>, vector<25x80xf32>, vector<5x80xf32> -> vector<5x80xf32>
    %150 = arith.addf %149, %118 : vector<5x80xf32>
    %cst_85 = arith.constant dense<0.000000e+00> : vector<5xf32>
    %151 = vector.multi_reduction <add>, %150, %cst_85 [1] : vector<5x80xf32> to vector<5xf32>
    %152 = vector.shape_cast %151 : vector<5xf32> to vector<5x1xf32>
    %cst_86 = arith.constant 8.000000e+01 : f32
    %153 = vector.broadcast %cst_86 : f32 to vector<5x1xf32>
    %154 = arith.divf %152, %153 : vector<5x1xf32>
    %155 = vector.broadcast %154 : vector<5x1xf32> to vector<5x80xf32>
    %156 = arith.subf %150, %155 : vector<5x80xf32>
    %157 = arith.mulf %156, %156 : vector<5x80xf32>
    %cst_87 = arith.constant dense<0.000000e+00> : vector<5xf32>
    %158 = vector.multi_reduction <add>, %157, %cst_87 [1] : vector<5x80xf32> to vector<5xf32>
    %159 = vector.shape_cast %158 : vector<5xf32> to vector<5x1xf32>
    %cst_88 = arith.constant 8.000000e+01 : f32
    %160 = vector.broadcast %cst_88 : f32 to vector<5x1xf32>
    %161 = arith.divf %159, %160 : vector<5x1xf32>
    %cst_89 = arith.constant 9.99999974E-6 : f32
    %162 = vector.broadcast %cst_89 : f32 to vector<5x1xf32>
    %163 = arith.addf %161, %162 : vector<5x1xf32>
    %164 = math.rsqrt %163 : vector<5x1xf32>
    %165 = vector.broadcast %164 : vector<5x1xf32> to vector<5x80xf32>
    %166 = arith.mulf %156, %165 : vector<5x80xf32>
    %167 = vector.broadcast %88 : vector<1x80xf32> to vector<5x80xf32>
    %168 = arith.mulf %166, %167 : vector<5x80xf32>
    %169 = vector.broadcast %90 : vector<1x80xf32> to vector<5x80xf32>
    %170 = arith.addf %168, %169 : vector<5x80xf32>
    %cst_90 = arith.constant dense<0.000000e+00> : vector<25x80xf32>
    %171 = tpu.matmul %38, %130, %cst_90 {dimension_numbers = #tpu.dot_dimension_numbers<[1], [0], [0], [1], [0, 0, 1, 1], [], []>} : vector<25x5xf32>, vector<5x80xf32>, vector<25x80xf32> -> vector<25x80xf32>
    %cst_91 = arith.constant dense<0.000000e+00> : vector<25x80xf32>
    %172 = tpu.matmul %57, %126, %cst_91 {dimension_numbers = #tpu.dot_dimension_numbers<[1], [0], [0], [1], [0, 0, 1, 1], [], []>} : vector<25x5xf32>, vector<5x80xf32>, vector<25x80xf32> -> vector<25x80xf32>
    %cst_92 = arith.constant dense<0.000000e+00> : vector<25x80xf32>
    %173 = tpu.matmul %57, %127, %cst_92 {dimension_numbers = #tpu.dot_dimension_numbers<[1], [0], [0], [1], [0, 0, 1, 1], [], []>} : vector<25x5xf32>, vector<5x80xf32>, vector<25x80xf32> -> vector<25x80xf32>
    %174 = arith.mulf %171, %172 : vector<25x80xf32>
    %cst_93 = arith.constant dense<0.000000e+00> : vector<25x20xf32>
    %175 = tpu.matmul %174, %12, %cst_93 {dimension_numbers = #tpu.dot_dimension_numbers<[1], [0], [0], [1], [0, 0, 1, 1], [], []>} : vector<25x80xf32>, vector<80x20xf32>, vector<25x20xf32> -> vector<25x20xf32>
    %cst_94 = arith.constant 5.000000e-01 : f32
    %176 = vector.broadcast %cst_94 : f32 to vector<25x20xf32>
    %177 = arith.mulf %175, %176 : vector<25x20xf32>
    %178 = math.exp %177 : vector<25x20xf32>
    %179 = vector.broadcast %124 : vector<25x1xf32> to vector<25x20xf32>
    %180 = arith.mulf %178, %179 : vector<25x20xf32>
    %cst_95 = arith.constant dense<0.000000e+00> : vector<5x20xf32>
    %181 = tpu.matmul %70, %180, %cst_95 {dimension_numbers = #tpu.dot_dimension_numbers<[1], [0], [0], [1], [0, 0, 1, 1], [], []>} : vector<5x25xf32>, vector<25x20xf32>, vector<5x20xf32> -> vector<5x20xf32>
    %cst_96 = arith.constant 9.99999993E-9 : f32
    %182 = vector.broadcast %cst_96 : f32 to vector<5x20xf32>
    %183 = arith.addf %181, %182 : vector<5x20xf32>
    %184 = tpu.reciprocal %183 {approx = true} : vector<5x20xf32> -> vector<5x20xf32>
    %cst_97 = arith.constant dense<0.000000e+00> : vector<25x20xf32>
    %185 = tpu.matmul %38, %184, %cst_97 {dimension_numbers = #tpu.dot_dimension_numbers<[1], [0], [0], [1], [0, 0, 1, 1], [], []>} : vector<25x5xf32>, vector<5x20xf32>, vector<25x20xf32> -> vector<25x20xf32>
    %186 = arith.mulf %180, %185 : vector<25x20xf32>
    %cst_98 = arith.constant dense<0.000000e+00> : vector<25x80xf32>
    %187 = tpu.matmul %186, %25, %cst_98 {dimension_numbers = #tpu.dot_dimension_numbers<[1], [0], [0], [1], [0, 0, 1, 1], [], []>} : vector<25x20xf32>, vector<20x80xf32>, vector<25x80xf32> -> vector<25x80xf32>
    %188 = arith.mulf %187, %173 : vector<25x80xf32>
    %cst_99 = arith.constant dense<0.000000e+00> : vector<5x80xf32>
    %189 = tpu.matmul %70, %188, %cst_99 {dimension_numbers = #tpu.dot_dimension_numbers<[1], [0], [0], [1], [0, 0, 1, 1], [], []>} : vector<5x25xf32>, vector<25x80xf32>, vector<5x80xf32> -> vector<5x80xf32>
    %190 = arith.addf %189, %120 : vector<5x80xf32>
    %cst_100 = arith.constant dense<0.000000e+00> : vector<5xf32>
    %191 = vector.multi_reduction <add>, %190, %cst_100 [1] : vector<5x80xf32> to vector<5xf32>
    %192 = vector.shape_cast %191 : vector<5xf32> to vector<5x1xf32>
    %cst_101 = arith.constant 8.000000e+01 : f32
    %193 = vector.broadcast %cst_101 : f32 to vector<5x1xf32>
    %194 = arith.divf %192, %193 : vector<5x1xf32>
    %195 = vector.broadcast %194 : vector<5x1xf32> to vector<5x80xf32>
    %196 = arith.subf %190, %195 : vector<5x80xf32>
    %197 = arith.mulf %196, %196 : vector<5x80xf32>
    %cst_102 = arith.constant dense<0.000000e+00> : vector<5xf32>
    %198 = vector.multi_reduction <add>, %197, %cst_102 [1] : vector<5x80xf32> to vector<5xf32>
    %199 = vector.shape_cast %198 : vector<5xf32> to vector<5x1xf32>
    %cst_103 = arith.constant 8.000000e+01 : f32
    %200 = vector.broadcast %cst_103 : f32 to vector<5x1xf32>
    %201 = arith.divf %199, %200 : vector<5x1xf32>
    %cst_104 = arith.constant 9.99999974E-6 : f32
    %202 = vector.broadcast %cst_104 : f32 to vector<5x1xf32>
    %203 = arith.addf %201, %202 : vector<5x1xf32>
    %204 = math.rsqrt %203 : vector<5x1xf32>
    %205 = vector.broadcast %204 : vector<5x1xf32> to vector<5x80xf32>
    %206 = arith.mulf %196, %205 : vector<5x80xf32>
    %207 = vector.broadcast %88 : vector<1x80xf32> to vector<5x80xf32>
    %208 = arith.mulf %206, %207 : vector<5x80xf32>
    %209 = vector.broadcast %90 : vector<1x80xf32> to vector<5x80xf32>
    %210 = arith.addf %208, %209 : vector<5x80xf32>
    %cst_105 = arith.constant dense<0.000000e+00> : vector<5x80xf32>
    %211 = tpu.matmul %170, %80, %cst_105 {dimension_numbers = #tpu.dot_dimension_numbers<[1], [0], [0], [1], [0, 0, 1, 1], [], []>} : vector<5x80xf32>, vector<80x80xf32>, vector<5x80xf32> -> vector<5x80xf32>
    %212 = vector.broadcast %82 : vector<1x80xf32> to vector<5x80xf32>
    %213 = arith.addf %211, %212 : vector<5x80xf32>
    %214 = math.tanh %213 : vector<5x80xf32>
    %cst_106 = arith.constant dense<0.000000e+00> : vector<5x80xf32>
    %215 = tpu.matmul %210, %84, %cst_106 {dimension_numbers = #tpu.dot_dimension_numbers<[1], [0], [0], [1], [0, 0, 1, 1], [], []>} : vector<5x80xf32>, vector<80x80xf32>, vector<5x80xf32> -> vector<5x80xf32>
    %216 = vector.broadcast %86 : vector<1x80xf32> to vector<5x80xf32>
    %217 = arith.addf %215, %216 : vector<5x80xf32>
    %218 = math.tanh %217 : vector<5x80xf32>
    %219 = vector.broadcast %92 : vector<1x80xf32> to vector<5x80xf32>
    %220 = arith.mulf %214, %219 : vector<5x80xf32>
    %cst_107 = arith.constant dense<0.000000e+00> : vector<5xf32>
    %221 = vector.multi_reduction <add>, %220, %cst_107 [1] : vector<5x80xf32> to vector<5xf32>
    %222 = vector.shape_cast %221 : vector<5xf32> to vector<5x1xf32>
    %223 = vector.broadcast %103 : f32 to vector<5x1xf32>
    %224 = arith.addf %222, %223 : vector<5x1xf32>
    %225 = vector.broadcast %94 : vector<1x80xf32> to vector<5x80xf32>
    %226 = arith.mulf %218, %225 : vector<5x80xf32>
    %cst_108 = arith.constant dense<0.000000e+00> : vector<5xf32>
    %227 = vector.multi_reduction <add>, %226, %cst_108 [1] : vector<5x80xf32> to vector<5xf32>
    %228 = vector.shape_cast %227 : vector<5xf32> to vector<5x1xf32>
    %229 = vector.broadcast %104 : f32 to vector<5x1xf32>
    %230 = arith.addf %228, %229 : vector<5x1xf32>
    %c0_109 = arith.constant 0 : index
    %c0_110 = arith.constant 0 : index
    %c0_111 = arith.constant 0 : index
    %c0_112 = arith.constant 0 : index
    %231 = vector.load %arg2[%c0_109, %c0_110, %c0_111, %c0_112] : memref<1x2x5x80xf32, #tpu.memory_space<vmem>>, vector<1x1x5x80xf32>
    %232 = vector.shape_cast %231 : vector<1x1x5x80xf32> to vector<5x80xf32>
    %c0_113 = arith.constant 0 : index
    %c1_114 = arith.constant 1 : index
    %c0_115 = arith.constant 0 : index
    %c0_116 = arith.constant 0 : index
    %233 = vector.load %arg2[%c0_113, %c1_114, %c0_115, %c0_116] : memref<1x2x5x80xf32, #tpu.memory_space<vmem>>, vector<1x1x5x80xf32>
    %234 = vector.shape_cast %233 : vector<1x1x5x80xf32> to vector<5x80xf32>
    %235 = vector.broadcast %100 : vector<1x80xf32> to vector<5x80xf32>
    %236 = arith.mulf %232, %235 : vector<5x80xf32>
    %cst_117 = arith.constant dense<0.000000e+00> : vector<5xf32>
    %237 = vector.multi_reduction <add>, %236, %cst_117 [1] : vector<5x80xf32> to vector<5xf32>
    %238 = vector.shape_cast %237 : vector<5xf32> to vector<5x1xf32>
    %239 = vector.broadcast %102 : vector<1x80xf32> to vector<5x80xf32>
    %240 = arith.mulf %234, %239 : vector<5x80xf32>
    %cst_118 = arith.constant dense<0.000000e+00> : vector<5xf32>
    %241 = vector.multi_reduction <add>, %240, %cst_118 [1] : vector<5x80xf32> to vector<5xf32>
    %242 = vector.shape_cast %241 : vector<5xf32> to vector<5x1xf32>
    %243 = arith.addf %238, %242 : vector<5x1xf32>
    %244 = vector.broadcast %106 : f32 to vector<5x1xf32>
    %245 = arith.addf %243, %244 : vector<5x1xf32>
    %246 = arith.negf %245 : vector<5x1xf32>
    %247 = math.exp %246 : vector<5x1xf32>
    %cst_119 = arith.constant 1.000000e+00 : f32
    %248 = vector.broadcast %cst_119 : f32 to vector<5x1xf32>
    %249 = arith.addf %248, %247 : vector<5x1xf32>
    %250 = arith.divf %248, %249 : vector<5x1xf32>
    %251 = vector.broadcast %250 : vector<5x1xf32> to vector<5x80xf32>
    %252 = arith.mulf %232, %251 : vector<5x80xf32>
    %cst_120 = arith.constant 1.000000e+00 : f32
    %253 = vector.broadcast %cst_120 : f32 to vector<5x1xf32>
    %254 = arith.subf %253, %250 : vector<5x1xf32>
    %255 = vector.broadcast %254 : vector<5x1xf32> to vector<5x80xf32>
    %256 = arith.mulf %234, %255 : vector<5x80xf32>
    %257 = arith.addf %252, %256 : vector<5x80xf32>
    %258 = math.exp %224 : vector<5x1xf32>
    %259 = arith.mulf %258, %123 : vector<5x1xf32>
    %cst_121 = arith.constant dense<0.000000e+00> : vector<1xf32>
    %260 = vector.multi_reduction <add>, %259, %cst_121 [0] : vector<5x1xf32> to vector<1xf32>
    %261 = vector.shape_cast %260 : vector<1xf32> to vector<1x1xf32>
    %cst_122 = arith.constant 9.99999993E-9 : f32
    %262 = vector.broadcast %cst_122 : f32 to vector<1x1xf32>
    %263 = arith.addf %261, %262 : vector<1x1xf32>
    %264 = tpu.reciprocal %263 {approx = true} : vector<1x1xf32> -> vector<1x1xf32>
    %265 = vector.broadcast %264 : vector<1x1xf32> to vector<5x1xf32>
    %266 = arith.mulf %259, %265 : vector<5x1xf32>
    %267 = vector.broadcast %266 : vector<5x1xf32> to vector<5x80xf32>
    %268 = arith.mulf %170, %267 : vector<5x80xf32>
    %cst_123 = arith.constant dense<0.000000e+00> : vector<80xf32>
    %269 = vector.multi_reduction <add>, %268, %cst_123 [0] : vector<5x80xf32> to vector<80xf32>
    %270 = vector.shape_cast %269 : vector<80xf32> to vector<1x80xf32>
    %271 = math.exp %230 : vector<5x1xf32>
    %272 = arith.mulf %271, %123 : vector<5x1xf32>
    %cst_124 = arith.constant dense<0.000000e+00> : vector<1xf32>
    %273 = vector.multi_reduction <add>, %272, %cst_124 [0] : vector<5x1xf32> to vector<1xf32>
    %274 = vector.shape_cast %273 : vector<1xf32> to vector<1x1xf32>
    %cst_125 = arith.constant 9.99999993E-9 : f32
    %275 = vector.broadcast %cst_125 : f32 to vector<1x1xf32>
    %276 = arith.addf %274, %275 : vector<1x1xf32>
    %277 = tpu.reciprocal %276 {approx = true} : vector<1x1xf32> -> vector<1x1xf32>
    %278 = vector.broadcast %277 : vector<1x1xf32> to vector<5x1xf32>
    %279 = arith.mulf %272, %278 : vector<5x1xf32>
    %280 = vector.broadcast %279 : vector<5x1xf32> to vector<5x80xf32>
    %281 = arith.mulf %210, %280 : vector<5x80xf32>
    %cst_126 = arith.constant dense<0.000000e+00> : vector<80xf32>
    %282 = vector.multi_reduction <add>, %281, %cst_126 [0] : vector<5x80xf32> to vector<80xf32>
    %283 = vector.shape_cast %282 : vector<80xf32> to vector<1x80xf32>
    %284 = arith.mulf %270, %96 : vector<1x80xf32>
    %cst_127 = arith.constant dense<0.000000e+00> : vector<1xf32>
    %285 = vector.multi_reduction <add>, %284, %cst_127 [1] : vector<1x80xf32> to vector<1xf32>
    %286 = vector.shape_cast %285 : vector<1xf32> to vector<1x1xf32>
    %287 = arith.mulf %283, %98 : vector<1x80xf32>
    %cst_128 = arith.constant dense<0.000000e+00> : vector<1xf32>
    %288 = vector.multi_reduction <add>, %287, %cst_128 [1] : vector<1x80xf32> to vector<1xf32>
    %289 = vector.shape_cast %288 : vector<1xf32> to vector<1x1xf32>
    %290 = arith.addf %286, %289 : vector<1x1xf32>
    %291 = vector.broadcast %105 : f32 to vector<1x1xf32>
    %292 = arith.addf %290, %291 : vector<1x1xf32>
    %293 = arith.negf %292 : vector<1x1xf32>
    %294 = math.exp %293 : vector<1x1xf32>
    %cst_129 = arith.constant 1.000000e+00 : f32
    %295 = vector.broadcast %cst_129 : f32 to vector<1x1xf32>
    %296 = arith.addf %295, %294 : vector<1x1xf32>
    %297 = arith.divf %295, %296 : vector<1x1xf32>
    %298 = vector.broadcast %297 : vector<1x1xf32> to vector<1x80xf32>
    %299 = arith.mulf %298, %270 : vector<1x80xf32>
    %cst_130 = arith.constant 1.000000e+00 : f32
    %300 = vector.broadcast %cst_130 : f32 to vector<1x1xf32>
    %301 = arith.subf %300, %297 : vector<1x1xf32>
    %302 = vector.broadcast %301 : vector<1x1xf32> to vector<1x80xf32>
    %303 = arith.mulf %302, %283 : vector<1x80xf32>
    %304 = arith.addf %299, %303 : vector<1x80xf32>
    %cst_131 = arith.constant dense<0.000000e+00> : vector<1x5xf32>
    %305 = tpu.matmul %304, %257, %cst_131 {dimension_numbers = #tpu.dot_dimension_numbers<[1], [1], [0], [0], [0, 0, 1, 0], [], []>} : vector<1x80xf32>, vector<5x80xf32>, vector<1x5xf32> -> vector<1x5xf32>
    %c0_132 = arith.constant 0 : index
    %c0_133 = arith.constant 0 : index
    %c0_134 = arith.constant 0 : index
    %306 = vector.load %arg5[%c0_132, %c0_133, %c0_134] : memref<1x1x5xf32, #tpu.memory_space<vmem>>, vector<1x1x5xf32>
    %307 = vector.shape_cast %306 : vector<1x1x5xf32> to vector<1x5xf32>
    %308 = vector.shape_cast %305 : vector<1x5xf32> to vector<1x1x5xf32>
    tpu.vector_store %arg5[%c0_132, %c0_133, %c0_134], %308 {strides = array<i32>} : memref<1x1x5xf32, #tpu.memory_space<vmem>>, vector<1x1x5xf32>,
    return
  }
  func.func @transform_0(%arg0: i32) -> (i32, i32, i32, i32) {
    %c0_i32 = arith.constant 0 : i32
    %c0_i32_0 = arith.constant 0 : i32
    %c0_i32_1 = arith.constant 0 : i32
    %c0_i32_2 = arith.constant 0 : i32
    return %arg0, %c0_i32, %c0_i32_0, %c0_i32_1 : i32, i32, i32, i32
  }
  func.func @transform_1(%arg0: i32) -> (i32, i32, i32, i32) {
    %c0_i32 = arith.constant 0 : i32
    %c0_i32_0 = arith.constant 0 : i32
    %c0_i32_1 = arith.constant 0 : i32
    %c0_i32_2 = arith.constant 0 : i32
    return %arg0, %c0_i32, %c0_i32_0, %c0_i32_1 : i32, i32, i32, i32
  }
  func.func @transform_2(%arg0: i32) -> (i32, i32, i32) {
    %c0_i32 = arith.constant 0 : i32
    %c0_i32_0 = arith.constant 0 : i32
    %c0_i32_1 = arith.constant 0 : i32
    %c0_i32_2 = arith.constant 0 : i32
    return %c0_i32, %c0_i32_0, %c0_i32_1 : i32, i32, i32
  }
  func.func @transform_3(%arg0: i32) -> i32 {
    %c0_i32 = arith.constant 0 : i32
    %c0_i32_0 = arith.constant 0 : i32
    return %c0_i32 : i32
  }
  func.func @transform_4(%arg0: i32) -> (i32, i32, i32) {
    %c0_i32 = arith.constant 0 : i32
    %c0_i32_0 = arith.constant 0 : i32
    %c0_i32_1 = arith.constant 0 : i32
    return %arg0, %c0_i32, %c0_i32_0 : i32, i32, i32
  }
}

</mosaic_0001>

<llo_original>
// kernel: tpu_custom_call.1
$region0: #{tpu_custom_call.1}
  #allocation0 [shape = 'u32[]', space=smem, size = 0x4, offset = 0x4, fixed_abs, tag = 'smem constant byte address 0x4 - core index']
  #allocation1 [shape = 'u32[72,128]{1,0:T(1,128)}', space=vmem, size = 0x9000, scoped, tag = 'internal scratch']
  %s0 = inlined_call_operand.vmem [shape: f32[2,3,5,80], index: 0, kind: input, shape index: {}]
  %s1 = inlined_call_operand.vmem [shape: f32[2,2,5,80], index: 1, kind: input, shape index: {}]
  %s2 = inlined_call_operand.hbm [shape: f32[5,81,384], index: 2, kind: input, shape index: {}]
  %s3 = inlined_call_operand.vmem [shape: f32[4], index: 3, kind: input, shape index: {}]
  %s4 = inlined_call_operand.hbm [shape: f32[2,1,5], index: 4, kind: output, shape index: {}]
  %s5 = sld [smem:[#allocation0]]
  $region57: #{tpu_custom_call.1} parent=0
    _
  %s7 = ssub.s32 1, %s5
  %s8 = scalar_select 0, %s7, %s5
  $region1: #{tpu_custom_call.1} parent=0
    #allocation2 [shape = 'u8[675840]{0}', space=vmem, size = 0xa5000, scoped, tag = 'input window, operand 2, single buffered']
    #allocation3 [shape = 's32[2]{0}', space=sflag, size = 0x8, scoped, tag = 'scoped memory for tpu_custom_call.1']
    #allocation4 [shape = 's32[2]{0}', space=sflag, size = 0x8, scoped, tag = 'scoped memory for tpu_custom_call.1']
    #allocation5 [shape = 's32[2]{0}', space=sflag, size = 0x8, scoped, tag = 'scoped memory for tpu_custom_call.1']
    #allocation6 [shape = 'u8[512]{0}', space=smem, size = 0x200, scoped, tag = 'input window, operand 3, single buffered']
    #allocation7 [shape = 'u8[1024]{0}', space=vmem, size = 0x400, scoped, tag = 'output window, operand 0']
    %9 = vsyncpa [#allocation3], 0
    %10 = vsyncpa [#allocation5], 0
    %11 = vsyncpa [#allocation4], 0
    %s12 = scalar_lea.sflag [#allocation4], 1
    %13 = vsyncpa %s12, 0
    loop: start=0, step=1, limit=4
    $region2: #{tpu_custom_call.1} parent=1 // loop_pre_header
      _
    $region3: #{tpu_custom_call.1} parent=1 // loop_header
      %s15 = sphi 0, %s19
      %p16 = scmp.ge.s32.totalorder %s15, 4
      %s25 = sphi 0, %s27
      %s28 = sphi 0, %s25
      %s29 = sphi 0, %s28
      %s45 = sphi 0, %s29
      %s51 = sphi 0, %s53
      %s54 = sphi 0, %s51
      %s55 = sphi 0, %s54
      %s71 = sphi 0, %s55
      %s75 = sphi 0, %s75
      %s77 = sphi 0, %s75
      %s78 = sphi 0, %s77
      %s92 = sphi 0, %s78
      %s96 = sphi 0, %s96
      %s98 = sphi 0, %s96
      %s99 = sphi 0, %s98
      %s113 = sphi 0, %s99
      %s119 = sphi 0, %s121
      %s122 = sphi 0, %s119
      %s123 = sphi 0, %s122
      %s139 = sphi 0, %s123
    $region4: #{tpu_custom_call.1} parent=1 // loop_header_branch
      %18 = sbr.rel (%p16) target = $region8
    $region5: #{tpu_custom_call.1} parent=1 // loop_body
      %s20 = ssub.s32 %s15, 1
      %s21 = ssub.s32 %s15, 2
      %s22 = sadd.s32 %s15, 1
      %s23 = ssub.s32 %s15, %s22
      %p24 = scmp.eq.s32.totalorder %s23, 0
      %s26 = sadd.s32 %s25, 1
      %s27 = scalar_select %p24, %s25, %s26
      %p30 = pneg %p24
      %p31 = scmp.eq.s32.totalorder %s15, 1
      %p32 = por %p30, %p31
      %p33 = scmp.ne.s32.totalorder %s25, %s28
      %p34 = scmp.eq.s32.totalorder %s15, 0
      %p35 = por %p33, %p34
      %p36 = scmp.ne.s32.totalorder %s25, %s28
      %p37 = scmp.eq.s32.totalorder %s20, 1
      %p38 = por %p36, %p37
      %p39 = scmp.ne.s32.totalorder %s28, %s29
      %p40 = scmp.eq.s32.totalorder %s20, 0
      %p41 = por %p39, %p40
      %p42 = scmp.ne.s32.totalorder %s28, %s29
      %p43 = scmp.eq.s32.totalorder %s21, 1
      %p44 = por %p42, %p43
      %p46 = scmp.ne.s32.totalorder %s29, %s45
      %p47 = scmp.eq.s32.totalorder %s21, 0
      %p48 = por %p46, %p47
      %s49 = ssub.s32 %s15, %s22
      %p50 = scmp.eq.s32.totalorder %s49, 0
      %s52 = sadd.s32 %s51, 1
      %s53 = scalar_select %p50, %s51, %s52
      %p56 = pneg %p50
      %p57 = scmp.eq.s32.totalorder %s15, 1
      %p58 = por %p56, %p57
      %p59 = scmp.ne.s32.totalorder %s51, %s54
      %p60 = scmp.eq.s32.totalorder %s15, 0
      %p61 = por %p59, %p60
      %p62 = scmp.ne.s32.totalorder %s51, %s54
      %p63 = scmp.eq.s32.totalorder %s20, 1
      %p64 = por %p62, %p63
      %p65 = scmp.ne.s32.totalorder %s54, %s55
      %p66 = scmp.eq.s32.totalorder %s20, 0
      %p67 = por %p65, %p66
      %p68 = scmp.ne.s32.totalorder %s54, %s55
      %p69 = scmp.eq.s32.totalorder %s21, 1
      %p70 = por %p68, %p69
      %p72 = scmp.ne.s32.totalorder %s55, %s71
      %p73 = scmp.eq.s32.totalorder %s21, 0
      %p74 = por %p72, %p73
      %s76 = sadd.s32 %s75, 1
      %p79 = scmp.eq.s32.totalorder %s15, 1
      %p80 = scmp.ne.s32.totalorder %s75, %s77
      %p81 = scmp.eq.s32.totalorder %s15, 0
      %p82 = por %p80, %p81
      %p83 = scmp.ne.s32.totalorder %s75, %s77
      %p84 = scmp.eq.s32.totalorder %s20, 1
      %p85 = por %p83, %p84
      %p86 = scmp.ne.s32.totalorder %s77, %s78
      %p87 = scmp.eq.s32.totalorder %s20, 0
      %p88 = por %p86, %p87
      %p89 = scmp.ne.s32.totalorder %s77, %s78
      %p90 = scmp.eq.s32.totalorder %s21, 1
      %p91 = por %p89, %p90
      %p93 = scmp.ne.s32.totalorder %s78, %s92
      %p94 = scmp.eq.s32.totalorder %s21, 0
      %p95 = por %p93, %p94
      %s97 = sadd.s32 %s96, 1
      %p100 = scmp.eq.s32.totalorder %s15, 1
      %p101 = scmp.ne.s32.totalorder %s96, %s98
      %p102 = scmp.eq.s32.totalorder %s15, 0
      %p103 = por %p101, %p102
      %p104 = scmp.ne.s32.totalorder %s96, %s98
      %p105 = scmp.eq.s32.totalorder %s20, 1
      %p106 = por %p104, %p105
      %p107 = scmp.ne.s32.totalorder %s98, %s99
      %p108 = scmp.eq.s32.totalorder %s20, 0
      %p109 = por %p107, %p108
      %p110 = scmp.ne.s32.totalorder %s98, %s99
      %p111 = scmp.eq.s32.totalorder %s21, 1
      %p112 = por %p110, %p111
      %p114 = scmp.ne.s32.totalorder %s99, %s113
      %p115 = scmp.eq.s32.totalorder %s21, 0
      %p116 = por %p114, %p115
      %s117 = ssub.s32 %s15, %s22
      %p118 = scmp.eq.s32.totalorder %s117, 0
      %s120 = sadd.s32 %s119, 1
      %s121 = scalar_select %p118, %s119, %s120
      %p124 = pneg %p118
      %p125 = scmp.eq.s32.totalorder %s15, 1
      %p126 = por %p124, %p125
      %p127 = scmp.ne.s32.totalorder %s119, %s122
      %p128 = scmp.eq.s32.totalorder %s15, 0
      %p129 = por %p127, %p128
      %p130 = scmp.ne.s32.totalorder %s119, %s122
      %p131 = scmp.eq.s32.totalorder %s20, 1
      %p132 = por %p130, %p131
      %p133 = scmp.ne.s32.totalorder %s122, %s123
      %p134 = scmp.eq.s32.totalorder %s20, 0
      %p135 = por %p133, %p134
      %p136 = scmp.ne.s32.totalorder %s122, %s123
      %p137 = scmp.eq.s32.totalorder %s21, 1
      %p138 = por %p136, %p137
      %p140 = scmp.ne.s32.totalorder %s123, %s139
      %p141 = scmp.eq.s32.totalorder %s21, 0
      %p142 = por %p140, %p141
      %p143 = scmp.le.s32.totalorder 1, %s15
      %p144 = scmp.lt.s32.totalorder %s15, 3
      %p145 = pnand %p143, %p144
      %p146 = pneg %p145
      // Predicated region
      $region9: #{tpu_custom_call.1} parent=5 // pred_check
        _
      $region10: #{tpu_custom_call.1} parent=5 // pred_check_branch
        %148 = sbr.rel (%p145) target = $region12
      $region11: #{tpu_custom_call.1} parent=5 // pred_region
        %s149 = ssub.s32 %s15, 1
        // Predicated region
        $region13: #{tpu_custom_call.1} parent=11 // pred_check
          %p150 = pneg %p88
        $region14: #{tpu_custom_call.1} parent=11 // pred_check_branch
          %152 = sbr.rel (%p150) target = $region16
        $region15: #{tpu_custom_call.1} parent=11 // pred_region
          %154 = vsyncadd [#allocation3], 0
          %s155 = sshll.u32 %s2, 4
          %s156 = int_to_ptr.hbm [resolvable:$true] %s155
          %s157 = sshll.u32 [#allocation2], 4
          %s158 = int_to_ptr.vmem [resolvable:$true] %s157
          %163 = dma.hbm_to_vmem [thread:$0]  %s156, 21120, %s158, [#allocation3], 384, 384, 24
        $region16: #{tpu_custom_call.1} parent=11 // pred_fallthru
          _
        // Predicated region
        $region17: #{tpu_custom_call.1} parent=11 // pred_check
          %p164 = pneg %p109
        $region18: #{tpu_custom_call.1} parent=11 // pred_check_branch
          %166 = sbr.rel (%p164) target = $region20
        $region19: #{tpu_custom_call.1} parent=11 // pred_region
          %168 = vsyncadd [#allocation5], 0
          %s170 = sshll.u32 %s3, 4
          %s171 = int_to_ptr.vmem [resolvable:$true] %s170
          %173 = dma.vmem_to_smem %s171, 16, [#allocation6], [#allocation5]
        $region20: #{tpu_custom_call.1} parent=11 // pred_fallthru
          _
      $region12: #{tpu_custom_call.1} parent=5 // pred_fallthru
        _
      %p174 = scmp.lt.s32.totalorder %s15, 2
      // Predicated region
      $region21: #{tpu_custom_call.1} parent=5 // pred_check
        %p175 = pneg %p174
      $region22: #{tpu_custom_call.1} parent=5 // pred_check_branch
        %177 = sbr.rel (%p175) target = $region24
      $region23: #{tpu_custom_call.1} parent=5 // pred_region
        // Predicated region
        $region25: #{tpu_custom_call.1} parent=23 // pred_check
          %p178 = pneg %p35
        $region26: #{tpu_custom_call.1} parent=23 // pred_check_branch
          %180 = sbr.rel (%p178) target = $region28
        $region27: #{tpu_custom_call.1} parent=23 // pred_region
          %p181 = scmp.lt.s32.totalorder %s15, 1
          %s182 = scalar_select %p181, %s15, 1
          %s183 = smul.addr %s182, 3
          %s184 = smul.addr %s183, 8
          %s185 = scalar_lea.vmem %s0, %s184
        $region28: #{tpu_custom_call.1} parent=23 // pred_fallthru
          _
        // Predicated region
        $region29: #{tpu_custom_call.1} parent=23 // pred_check
          %p186 = pneg %p61
        $region30: #{tpu_custom_call.1} parent=23 // pred_check_branch
          %188 = sbr.rel (%p186) target = $region32
        $region31: #{tpu_custom_call.1} parent=23 // pred_region
          %p189 = scmp.lt.s32.totalorder %s15, 1
          %s190 = scalar_select %p189, %s15, 1
          %s191 = smul.addr %s190, 2
          %s192 = smul.addr %s191, 8
          %s193 = scalar_lea.vmem %s1, %s192
        $region32: #{tpu_custom_call.1} parent=23 // pred_fallthru
          _
      $region24: #{tpu_custom_call.1} parent=5 // pred_fallthru
        _
      %p194 = scmp.le.s32.totalorder 1, %s15
      %p195 = scmp.lt.s32.totalorder %s15, 3
      %p196 = pnand %p194, %p195
      %p197 = pneg %p196
      // Predicated region
      $region33: #{tpu_custom_call.1} parent=5 // pred_check
        _
      $region34: #{tpu_custom_call.1} parent=5 // pred_check_branch
        %199 = sbr.rel (%p196) target = $region36
      $region35: #{tpu_custom_call.1} parent=5 // pred_region
        %s200 = ssub.s32 %s15, 1
        // Predicated region
        $region37: #{tpu_custom_call.1} parent=35 // pred_check
          %p201 = pneg %p88
        $region38: #{tpu_custom_call.1} parent=35 // pred_check_branch
          %203 = sbr.rel (%p201) target = $region40
        $region39: #{tpu_custom_call.1} parent=35 // pred_region
          %205 = dma.done [#allocation3], 21120
        $region40: #{tpu_custom_call.1} parent=35 // pred_fallthru
          _
        // Predicated region
        $region41: #{tpu_custom_call.1} parent=35 // pred_check
          %p206 = pneg %p109
        $region42: #{tpu_custom_call.1} parent=35 // pred_check_branch
          %208 = sbr.rel (%p206) target = $region44
        $region43: #{tpu_custom_call.1} parent=35 // pred_region
          %210 = dma.done [#allocation5], 16
        $region44: #{tpu_custom_call.1} parent=35 // pred_fallthru
          _
        %211 = sfence
        %p212 = scmp.lt.s32.totalorder %s20, 1
        %s213 = scalar_select %p212, %s20, 1
        %s214 = smul.addr %s213, 3
        %s215 = smul.addr %s214, 8
        %s216 = scalar_lea.vmem %s0, %s215
        %p217 = pneg %p41
        %p218 = pneg %p38
        %p219 = scmp.lt.s32.totalorder %s20, 1
        %s220 = scalar_select %p219, %s20, 1
        %s221 = smul.addr %s220, 2
        %s222 = smul.addr %s221, 8
        %s223 = scalar_lea.vmem %s1, %s222
        %p224 = pneg %p67
        %p225 = pneg %p64
        %p226 = pneg %p88
        %p227 = pneg %p85
        %p228 = pneg %p109
        %p229 = pneg %p106
        %p230 = pneg %p135
        %p231 = pneg %p132
        %s232 = sand.u32 %s122, 1
        %s233 = scalar_lea.sflag [#allocation4], %s232
        %s234 = sand.u32 %s122, 1
        %s235 = scalar_lea.vmem [#allocation7], %s234
        %p236 = scmp.lt.s32.totalorder %s20, 1
        %s237 = scalar_select %p236, %s20, 1
        %s238 = smul.addr %s237, 3
        %s239 = smul.addr %s238, 8
        %s240 = scalar_lea.vmem %s0, %s239
        %p241 = scmp.lt.s32.totalorder %s20, 1
        %s242 = scalar_select %p241, %s20, 1
        %s243 = smul.addr %s242, 2
        %s244 = smul.addr %s243, 8
        %s245 = scalar_lea.vmem %s1, %s244
        %v246 = vlaneseq
        %v247 = vshrl.u32 %v246, 7
        %v248 = vadd.s32 %v247, 8
        %v249 = vadd.s32 %v247, 16
        %v250 = vadd.s32 %v247, 24
        %v251 = vadd.s32 %v247, 32
        %v252 = vadd.s32 %v247, 40
        %v253 = vadd.s32 %v247, 48
        %v254 = vadd.s32 %v247, 56
        %v255 = vadd.s32 %v247, 64
        %v256 = vadd.s32 %v247, 72
        %v257 = vlaneseq
        %v258 = vand.u32 %v257, 127
        %v259 = vmul.u32 %v258, 4
        %vm260 = vcmp.ge.s32.totalorder %v247, %v259
        %vm261 = vcmp.ge.s32.totalorder %v248, %v259
        %vm262 = vcmp.ge.s32.totalorder %v249, %v259
        %vm263 = vcmp.ge.s32.totalorder %v250, %v259
        %vm264 = vcmp.ge.s32.totalorder %v251, %v259
        %vm265 = vcmp.ge.s32.totalorder %v252, %v259
        %vm266 = vcmp.ge.s32.totalorder %v253, %v259
        %vm267 = vcmp.ge.s32.totalorder %v254, %v259
        %vm268 = vcmp.ge.s32.totalorder %v255, %v259
        %vm269 = vcmp.ge.s32.totalorder %v256, %v259
        %v270 = vadd.s32 %v258, 1
        %v271 = vmul.u32 %v270, 4
        %vm272 = vcmp.lt.s32.totalorder %v247, %v271
        %vm273 = vcmp.lt.s32.totalorder %v248, %v271
        %vm274 = vcmp.lt.s32.totalorder %v249, %v271
        %vm275 = vcmp.lt.s32.totalorder %v250, %v271
        %vm276 = vcmp.lt.s32.totalorder %v251, %v271
        %vm277 = vcmp.lt.s32.totalorder %v252, %v271
        %vm278 = vcmp.lt.s32.totalorder %v253, %v271
        %vm279 = vcmp.lt.s32.totalorder %v254, %v271
        %vm280 = vcmp.lt.s32.totalorder %v255, %v271
        %vm281 = vcmp.lt.s32.totalorder %v256, %v271
        %vm282 = vmand %vm260, %vm272
        %vm283 = vmand %vm261, %vm273
        %vm284 = vmand %vm262, %vm274
        %vm285 = vmand %vm263, %vm275
        %vm286 = vmand %vm264, %vm276
        %vm287 = vmand %vm265, %vm277
        %vm288 = vmand %vm266, %vm278
        %vm289 = vmand %vm267, %vm279
        %vm290 = vmand %vm268, %vm280
        %vm291 = vmand %vm269, %vm281
        %v292 = vsel %vm282, 1, 0
        %v293 = vsel %vm283, 1, 0
        %v294 = vsel %vm284, 1, 0
        %v295 = vsel %vm285, 1, 0
        %v296 = vsel %vm286, 1, 0
        %v297 = vsel %vm287, 1, 0
        %v298 = vsel %vm288, 1, 0
        %v299 = vsel %vm289, 1, 0
        %v300 = vsel %vm290, 1, 0
        %v301 = vsel %vm291, 1, 0
        %v302 = vcvt.s32.f32 %v292
        %v303 = vcvt.s32.f32 %v293
        %v304 = vcvt.s32.f32 %v294
        %v305 = vcvt.s32.f32 %v295
        %v306 = vcvt.s32.f32 %v296
        %v307 = vcvt.s32.f32 %v297
        %v308 = vcvt.s32.f32 %v298
        %v309 = vcvt.s32.f32 %v299
        %v310 = vcvt.s32.f32 %v300
        %v311 = vcvt.s32.f32 %v301
        %v312 = vmul.u32 %v247, 4
        %v313 = vmul.u32 %v248, 4
        %v314 = vmul.u32 %v249, 4
        %vm315 = vcmp.ge.s32.totalorder %v258, %v312
        %vm316 = vcmp.ge.s32.totalorder %v258, %v313
        %vm317 = vcmp.ge.s32.totalorder %v258, %v314
        %v318 = vadd.s32 %v247, 1
        %v319 = vadd.s32 %v248, 1
        %v320 = vadd.s32 %v249, 1
        %v321 = vmul.u32 %v318, 4
        %v322 = vmul.u32 %v319, 4
        %v323 = vmul.u32 %v320, 4
        %vm324 = vcmp.lt.s32.totalorder %v258, %v321
        %vm325 = vcmp.lt.s32.totalorder %v258, %v322
        %vm326 = vcmp.lt.s32.totalorder %v258, %v323
        %vm327 = vmand %vm315, %vm324
        %vm328 = vmand %vm316, %vm325
        %vm329 = vmand %vm317, %vm326
        %v330 = vsel %vm327, 1, 0
        %v331 = vsel %vm328, 1, 0
        %v332 = vsel %vm329, 1, 0
        %v333 = vcvt.s32.f32 %v330
        %v334 = vcvt.s32.f32 %v331
        %v335 = vcvt.s32.f32 %v332
        %v336 = vmul.u32 %v258, 5
        %vm337 = vcmp.ge.s32.totalorder %v247, %v336
        %vm338 = vcmp.ge.s32.totalorder %v248, %v336
        %vm339 = vcmp.ge.s32.totalorder %v249, %v336
        %vm340 = vcmp.ge.s32.totalorder %v250, %v336
        %v341 = vmul.u32 %v270, 5
        %vm342 = vcmp.lt.s32.totalorder %v247, %v341
        %vm343 = vcmp.lt.s32.totalorder %v248, %v341
        %vm344 = vcmp.lt.s32.totalorder %v249, %v341
        %vm345 = vcmp.lt.s32.totalorder %v250, %v341
        %vm346 = vmand %vm337, %vm342
        %vm347 = vmand %vm338, %vm343
        %vm348 = vmand %vm339, %vm344
        %vm349 = vmand %vm340, %vm345
        %v350 = vsel %vm346, 1, 0
        %v351 = vsel %vm347, 1, 0
        %v352 = vsel %vm348, 1, 0
        %v353 = vsel %vm349, 1, 0
        %v354 = vcvt.s32.f32 %v350
        %v355 = vcvt.s32.f32 %v351
        %v356 = vcvt.s32.f32 %v352
        %v357 = vcvt.s32.f32 %v353
        %vm358 = vcmp.eq.s32.totalorder %v247, %v258
        %vm359 = vcmp.eq.s32.totalorder %v248, %v258
        %vm360 = vcmp.eq.s32.totalorder %v249, %v258
        %vm361 = vcmp.eq.s32.totalorder %v250, %v258
        %v362 = vadd.s32 %v258, 5
        %vm363 = vcmp.eq.s32.totalorder %v247, %v362
        %vm364 = vcmp.eq.s32.totalorder %v248, %v362
        %vm365 = vcmp.eq.s32.totalorder %v249, %v362
        %vm366 = vcmp.eq.s32.totalorder %v250, %v362
        %vm367 = vmor %vm358, %vm363
        %vm368 = vmor %vm359, %vm364
        %vm369 = vmor %vm360, %vm365
        %vm370 = vmor %vm361, %vm366
        %v371 = vadd.s32 %v258, 10
        %vm372 = vcmp.eq.s32.totalorder %v247, %v371
        %vm373 = vcmp.eq.s32.totalorder %v248, %v371
        %vm374 = vcmp.eq.s32.totalorder %v249, %v371
        %vm375 = vcmp.eq.s32.totalorder %v250, %v371
        %vm376 = vmor %vm367, %vm372
        %vm377 = vmor %vm368, %vm373
        %vm378 = vmor %vm369, %vm374
        %vm379 = vmor %vm370, %vm375
        %v380 = vadd.s32 %v258, 15
        %vm381 = vcmp.eq.s32.totalorder %v247, %v380
        %vm382 = vcmp.eq.s32.totalorder %v248, %v380
        %vm383 = vcmp.eq.s32.totalorder %v249, %v380
        %vm384 = vcmp.eq.s32.totalorder %v250, %v380
        %vm385 = vmor %vm376, %vm381
        %vm386 = vmor %vm377, %vm382
        %vm387 = vmor %vm378, %vm383
        %vm388 = vmor %vm379, %vm384
        %v389 = vadd.s32 %v258, 20
        %vm390 = vcmp.eq.s32.totalorder %v247, %v389
        %vm391 = vcmp.eq.s32.totalorder %v248, %v389
        %vm392 = vcmp.eq.s32.totalorder %v249, %v389
        %vm393 = vcmp.eq.s32.totalorder %v250, %v389
        %vm394 = vmor %vm385, %vm390
        %vm395 = vmor %vm386, %vm391
        %vm396 = vmor %vm387, %vm392
        %vm397 = vmor %vm388, %vm393
        %v398 = vsel %vm394, 1, 0
        %v399 = vsel %vm395, 1, 0
        %v400 = vsel %vm396, 1, 0
        %v401 = vsel %vm397, 1, 0
        %v402 = vcvt.s32.f32 %v398
        %v403 = vcvt.s32.f32 %v399
        %v404 = vcvt.s32.f32 %v400
        %v405 = vcvt.s32.f32 %v401
        %v406 = vmul.u32 %v247, 5
        %vm407 = vcmp.ge.s32.totalorder %v258, %v406
        %v408 = vmul.u32 %v318, 5
        %vm409 = vcmp.lt.s32.totalorder %v258, %v408
        %vm410 = vmand %vm407, %vm409
        %v411 = vsel %vm410, 1, 0
        %v412 = vcvt.s32.f32 %v411
        %v413 = vld [vmem:[#allocation2] sm:$0xff]
        %v414 = vld [vmem:[#allocation2 + $0x8] sm:$0xff]
        %v415 = vld [vmem:[#allocation2 + $0x10] sm:$0xff]
        %v416 = vld [vmem:[#allocation2 + $0x18] sm:$0xff]
        %v417 = vld [vmem:[#allocation2 + $0x20] sm:$0xff]
        %v418 = vld [vmem:[#allocation2 + $0x28] sm:$0xff]
        %v419 = vld [vmem:[#allocation2 + $0x30] sm:$0xff]
        %v420 = vld [vmem:[#allocation2 + $0x38] sm:$0xff]
        %v421 = vld [vmem:[#allocation2 + $0x40] sm:$0xff]
        %v422 = vld [vmem:[#allocation2 + $0x48] sm:$0xff]
        %v423 = vld [vmem:[#allocation2 + $0x50] sm:$0xff]
        %v424 = vld [vmem:[#allocation2 + $0x58] sm:$0xff]
        %v425 = vld [vmem:[#allocation2 + $0x60] sm:$0xff]
        %v426 = vld [vmem:[#allocation2 + $0x68] sm:$0xff]
        %v427 = vld [vmem:[#allocation2 + $0x70] sm:$0xff]
        %v428 = vld [vmem:[#allocation2 + $0x78] sm:$0xff]
        %v429 = vld [vmem:[#allocation2 + $0x80] sm:$0xff]
        %v430 = vld [vmem:[#allocation2 + $0x88] sm:$0xff]
        %v431 = vld [vmem:[#allocation2 + $0x90] sm:$0xff]
        %v432 = vld [vmem:[#allocation2 + $0x98] sm:$0xff]
        %v433 = vld [vmem:[#allocation2 + $0xa0] sm:$0xff]
        %v434 = vld [vmem:[#allocation2 + $0xa8] sm:$0xff]
        %v435 = vld [vmem:[#allocation2 + $0xb0] sm:$0xff]
        %v436 = vld [vmem:[#allocation2 + $0xb8] sm:$0xff]
        %v437 = vld [vmem:[#allocation2 + $0xc0] sm:$0xff]
        %v438 = vld [vmem:[#allocation2 + $0xc8] sm:$0xff]
        %v439 = vld [vmem:[#allocation2 + $0xd0] sm:$0xff]
        %v440 = vld [vmem:[#allocation2 + $0xd8] sm:$0xff]
        %v441 = vld [vmem:[#allocation2 + $0xe0] sm:$0xff]
        %v442 = vld [vmem:[#allocation2 + $0xe8] sm:$0xff]
        %s443 = scalar_lea.vmem [#allocation2], 240
        %v444 = vld [vmem:[%s443] ss:$8 sm:$0x7]
        %s445 = scalar_lea.vmem [#allocation2], 264
        %v446 = vld [vmem:[%s445] sm:$0xff]
        %v447 = vld [vmem:[%s445 + $0x8] sm:$0xff]
        %v448 = vld [vmem:[%s445 + $0x10] sm:$0xff]
        %v449 = vld [vmem:[%s445 + $0x18] sm:$0xff]
        %v450 = vld [vmem:[%s445 + $0x20] sm:$0xff]
        %v451 = vld [vmem:[%s445 + $0x28] sm:$0xff]
        %v452 = vld [vmem:[%s445 + $0x30] sm:$0xff]
        %v453 = vld [vmem:[%s445 + $0x38] sm:$0xff]
        %v454 = vld [vmem:[%s445 + $0x40] sm:$0xff]
        %v455 = vld [vmem:[%s445 + $0x48] sm:$0xff]
        %v456 = vld [vmem:[%s445 + $0x50] sm:$0xff]
        %v457 = vld [vmem:[%s445 + $0x58] sm:$0xff]
        %v458 = vld [vmem:[%s445 + $0x60] sm:$0xff]
        %v459 = vld [vmem:[%s445 + $0x68] sm:$0xff]
        %v460 = vld [vmem:[%s445 + $0x70] sm:$0xff]
        %v461 = vld [vmem:[%s445 + $0x78] sm:$0xff]
        %v462 = vld [vmem:[%s445 + $0x80] sm:$0xff]
        %v463 = vld [vmem:[%s445 + $0x88] sm:$0xff]
        %v464 = vld [vmem:[%s445 + $0x90] sm:$0xff]
        %v465 = vld [vmem:[%s445 + $0x98] sm:$0xff]
        %v466 = vld [vmem:[%s445 + $0xa0] sm:$0xff]
        %v467 = vld [vmem:[%s445 + $0xa8] sm:$0xff]
        %v468 = vld [vmem:[%s445 + $0xb0] sm:$0xff]
        %v469 = vld [vmem:[%s445 + $0xb8] sm:$0xff]
        %v470 = vld [vmem:[%s445 + $0xc0] sm:$0xff]
        %v471 = vld [vmem:[%s445 + $0xc8] sm:$0xff]
        %v472 = vld [vmem:[%s445 + $0xd0] sm:$0xff]
        %v473 = vld [vmem:[%s445 + $0xd8] sm:$0xff]
        %v474 = vld [vmem:[%s445 + $0xe0] sm:$0xff]
        %v475 = vld [vmem:[%s445 + $0xe8] sm:$0xff]
        %s476 = scalar_lea.vmem %s445, 240 [#allocation2]
        %v477 = vld [vmem:[%s476] ss:$8 sm:$0x7]
        %s478 = scalar_lea.vmem [#allocation2], 528
        %v479 = vld [vmem:[%s478] sm:$0xff]
        %v480 = vld [vmem:[%s478 + $0x18] sm:$0xff]
        %v481 = vld [vmem:[%s478 + $0x30] sm:$0xff]
        %v482 = vld [vmem:[%s478 + $0x48] sm:$0xff]
        %v483 = vld [vmem:[%s478 + $0x60] sm:$0xff]
        %v484 = vld [vmem:[%s478 + $0x78] sm:$0xff]
        %v485 = vld [vmem:[%s478 + $0x90] sm:$0xff]
        %v486 = vld [vmem:[%s478 + $0xa8] sm:$0xff]
        %v487 = vld [vmem:[%s478 + $0xc0] sm:$0xff]
        %v488 = vld [vmem:[%s478 + $0xd8] sm:$0xff]
        %v489 = vld [vmem:[%s478 + $0xf0] ss:$0 sm:$0xff]
        %s490 = scalar_lea.vmem [#allocation2], 792
        %v491 = vld [vmem:[%s490] sm:$0xff]
        %v492 = vld [vmem:[%s490 + $0x18] sm:$0xff]
        %v493 = vld [vmem:[%s490 + $0x30] sm:$0xff]
        %v494 = vld [vmem:[%s490 + $0x48] sm:$0xff]
        %v495 = vld [vmem:[%s490 + $0x60] sm:$0xff]
        %v496 = vld [vmem:[%s490 + $0x78] sm:$0xff]
        %v497 = vld [vmem:[%s490 + $0x90] sm:$0xff]
        %v498 = vld [vmem:[%s490 + $0xa8] sm:$0xff]
        %v499 = vld [vmem:[%s490 + $0xc0] sm:$0xff]
        %v500 = vld [vmem:[%s490 + $0xd8] sm:$0xff]
        %v501 = vld [vmem:[%s490 + $0xf0] ss:$0 sm:$0xff]
        %s502 = scalar_lea.vmem [#allocation2], 1056
        %v503 = vld [vmem:[%s502] ss:$0 sm:$0xff]
        %v504 = vld [vmem:[%s502 + $0x1] ss:$0 sm:$0xff]
        %v505 = vld [vmem:[%s502 + $0x2] ss:$0 sm:$0xff]
        %v506 = vld [vmem:[%s502 + $0x3] ss:$0 sm:$0xff]
        %v507 = vld [vmem:[%s502 + $0x4] ss:$0 sm:$0xff]
        %v508 = vld [vmem:[%s502 + $0x5] ss:$0 sm:$0xff]
        %v509 = vld [vmem:[%s502 + $0x6] ss:$0 sm:$0xff]
        %v510 = vld [vmem:[%s502 + $0x7] ss:$0 sm:$0xff]
        %s511 = sld [smem:[#allocation6]]
        %s512 = sld [smem:[#allocation6 + $0x1]]
        %s513 = sld [smem:[#allocation6 + $0x2]]
        %s514 = sld [smem:[#allocation6 + $0x3]]
        %v515 = vld [vmem:[%s240] sm:$0x1f]
        %s516 = scalar_lea.vmem %s240, 8
        %v517 = vld [vmem:[%s516] sm:$0x1f]
        %v519 = vperm.slane %v444, 0
        %v520 = vperm.slane %v444, 1
        %v521 = vperm.slane %v444, 2
        %vm525 = vcmask 654336
        %v527 = vsel %vm525, %v515, 0
        %529 = vmatpush.msra.mxu0 0.0
        %530 = vmatpush.msra.mxu0 0.0
        %531 = vmatpush.msra.mxu0 0.0
        %532 = vmatpush.msra.mxu0 0.0
        %533 = vmatpush.msra.mxu0 0.0
        %534 = vmatpush.msra.mxu0 0.0
        %535 = vmatpush.msra.mxu0 %v440
        %536 = vmatpush.msra.mxu0 %v437
        %537 = vmatpush.msra.mxu0 %v434
        %538 = vmatpush.msra.mxu0 %v431
        %539 = vmatpush.msra.mxu0 %v428
        %540 = vmatpush.msra.mxu0 %v425
        %541 = vmatpush.msra.mxu0 %v422
        %542 = vmatpush.msra.mxu0 %v419
        %543 = vmatpush.msra.mxu0 %v416
        %544 = vmatpush.msra.mxu0 %v413
        %545 = vmatmul.f32.gmra.mxu0 %v527
        %v546 = vpop.f32.mrf.mxu0
        %v547 = vadd.f32 %v519, %v546
        %548 = vdwg.mxu0
        %549 = vmatpush.msra.mxu0 0.0
        %550 = vmatpush.msra.mxu0 0.0
        %551 = vmatpush.msra.mxu0 0.0
        %552 = vmatpush.msra.mxu0 0.0
        %553 = vmatpush.msra.mxu0 0.0
        %554 = vmatpush.msra.mxu0 0.0
        %555 = vmatpush.msra.mxu0 %v441
        %556 = vmatpush.msra.mxu0 %v438
        %557 = vmatpush.msra.mxu0 %v435
        %558 = vmatpush.msra.mxu0 %v432
        %559 = vmatpush.msra.mxu0 %v429
        %560 = vmatpush.msra.mxu0 %v426
        %561 = vmatpush.msra.mxu0 %v423
        %562 = vmatpush.msra.mxu0 %v420
        %563 = vmatpush.msra.mxu0 %v417
        %564 = vmatpush.msra.mxu0 %v414
        %565 = vmatmul.f32.gmra.mxu0 %v527
        %v566 = vpop.f32.mrf.mxu0
        %v567 = vadd.f32 %v520, %v566
        %568 = vdwg.mxu0
        %569 = vmatpush.msra.mxu0 0.0
        %570 = vmatpush.msra.mxu0 0.0
        %571 = vmatpush.msra.mxu0 0.0
        %572 = vmatpush.msra.mxu0 0.0
        %573 = vmatpush.msra.mxu0 0.0
        %574 = vmatpush.msra.mxu0 0.0
        %575 = vmatpush.msra.mxu0 %v442
        %576 = vmatpush.msra.mxu0 %v439
        %577 = vmatpush.msra.mxu0 %v436
        %578 = vmatpush.msra.mxu0 %v433
        %579 = vmatpush.msra.mxu0 %v430
        %580 = vmatpush.msra.mxu0 %v427
        %581 = vmatpush.msra.mxu0 %v424
        %582 = vmatpush.msra.mxu0 %v421
        %583 = vmatpush.msra.mxu0 %v418
        %584 = vmatpush.msra.mxu0 %v415
        %585 = vmatmul.f32.gmra.mxu0 %v527
        %v586 = vpop.f32.mrf.mxu0
        %v587 = vadd.f32 %v521, %v586
        %588 = vdwg.mxu0
        %v590 = vperm.slane %v477, 0
        %v591 = vperm.slane %v477, 1
        %v592 = vperm.slane %v477, 2
        %v597 = vsel %vm525, %v517, 0
        %599 = vmatpush.msra.mxu0 0.0
        %600 = vmatpush.msra.mxu0 0.0
        %601 = vmatpush.msra.mxu0 0.0
        %602 = vmatpush.msra.mxu0 0.0
        %603 = vmatpush.msra.mxu0 0.0
        %604 = vmatpush.msra.mxu0 0.0
        %605 = vmatpush.msra.mxu0 %v473
        %606 = vmatpush.msra.mxu0 %v470
        %607 = vmatpush.msra.mxu0 %v467
        %608 = vmatpush.msra.mxu0 %v464
        %609 = vmatpush.msra.mxu0 %v461
        %610 = vmatpush.msra.mxu0 %v458
        %611 = vmatpush.msra.mxu0 %v455
        %612 = vmatpush.msra.mxu0 %v452
        %613 = vmatpush.msra.mxu0 %v449
        %614 = vmatpush.msra.mxu0 %v446
        %615 = vmatmul.f32.gmra.mxu0 %v597
        %v616 = vpop.f32.mrf.mxu0
        %v617 = vadd.f32 %v590, %v616
        %618 = vdwg.mxu0
        %619 = vmatpush.msra.mxu0 0.0
        %620 = vmatpush.msra.mxu0 0.0
        %621 = vmatpush.msra.mxu0 0.0
        %622 = vmatpush.msra.mxu0 0.0
        %623 = vmatpush.msra.mxu0 0.0
        %624 = vmatpush.msra.mxu0 0.0
        %625 = vmatpush.msra.mxu0 %v474
        %626 = vmatpush.msra.mxu0 %v471
        %627 = vmatpush.msra.mxu0 %v468
        %628 = vmatpush.msra.mxu0 %v465
        %629 = vmatpush.msra.mxu0 %v462
        %630 = vmatpush.msra.mxu0 %v459
        %631 = vmatpush.msra.mxu0 %v456
        %632 = vmatpush.msra.mxu0 %v453
        %633 = vmatpush.msra.mxu0 %v450
        %634 = vmatpush.msra.mxu0 %v447
        %635 = vmatmul.f32.gmra.mxu0 %v597
        %v636 = vpop.f32.mrf.mxu0
        %v637 = vadd.f32 %v591, %v636
        %638 = vdwg.mxu0
        %639 = vmatpush.msra.mxu0 0.0
        %640 = vmatpush.msra.mxu0 0.0
        %641 = vmatpush.msra.mxu0 0.0
        %642 = vmatpush.msra.mxu0 0.0
        %643 = vmatpush.msra.mxu0 0.0
        %644 = vmatpush.msra.mxu0 0.0
        %645 = vmatpush.msra.mxu0 %v475
        %646 = vmatpush.msra.mxu0 %v472
        %647 = vmatpush.msra.mxu0 %v469
        %648 = vmatpush.msra.mxu0 %v466
        %649 = vmatpush.msra.mxu0 %v463
        %650 = vmatpush.msra.mxu0 %v460
        %651 = vmatpush.msra.mxu0 %v457
        %652 = vmatpush.msra.mxu0 %v454
        %653 = vmatpush.msra.mxu0 %v451
        %654 = vmatpush.msra.mxu0 %v448
        %655 = vmatmul.f32.gmra.mxu0 %v597
        %v656 = vpop.f32.mrf.mxu0
        %v657 = vadd.f32 %v592, %v656
        %658 = vdwg.mxu0
        %s659 = scalar_lea.vmem %s240, 16
        %v660 = vld [vmem:[%s659] sm:$0x1f]
        %vm661 = vcmask 39936
        %v663 = vsel %vm661, %v402, 0
        %v666 = vsel %vm661, %v403, 0
        %v669 = vsel %vm661, %v404, 0
        %v672 = vsel %vm661, %v405, 0
        %vm674 = vcmask 1044480
        %v676 = vsel %vm674, %v660, 0
        %678 = vmatpush.msra.mxu0 0.0
        %679 = vmatpush.msra.mxu0 0.0
        %680 = vmatpush.msra.mxu0 0.0
        %681 = vmatpush.msra.mxu0 0.0
        %682 = vmatpush.msra.mxu0 0.0
        %683 = vmatpush.msra.mxu0 0.0
        %684 = vmatpush.msra.mxu0 0.0
        %685 = vmatpush.msra.mxu0 0.0
        %686 = vmatpush.msra.mxu0 0.0
        %687 = vmatpush.msra.mxu0 0.0
        %688 = vmatpush.msra.mxu0 0.0
        %689 = vmatpush.msra.mxu0 0.0
        %690 = vmatpush.msra.mxu0 0.0
        %691 = vmatpush.msra.mxu0 0.0
        %692 = vmatpush.msra.mxu0 0.0
        %693 = vmatpush.msra.mxu0 %v676
        %694 = vmatmul.f32.gmra.mxu0 %v663
        %v695 = vpop.f32.mrf.mxu0
        %v696 = vadd.f32 0.0, %v695
        %697 = vmatmul.f32.gmra.mxu0 %v666
        %v698 = vpop.f32.mrf.mxu0
        %v699 = vadd.f32 0.0, %v698
        %700 = vmatmul.f32.gmra.mxu0 %v669
        %v701 = vpop.f32.mrf.mxu0
        %v702 = vadd.f32 0.0, %v701
        %703 = vmatmul.f32.gmra.mxu0 %v672
        %v704 = vpop.f32.mrf.mxu0
        %v705 = vadd.f32 0.0, %v704
        %706 = vdwg.mxu0
        %v708 = vsel %vm661, %v354, 0
        %v711 = vsel %vm661, %v355, 0
        %v714 = vsel %vm661, %v356, 0
        %v717 = vsel %vm661, %v357, 0
        %v720 = vsel %vm674, %v547, 0
        %722 = vmatpush.msra.mxu0 0.0
        %723 = vmatpush.msra.mxu0 0.0
        %724 = vmatpush.msra.mxu0 0.0
        %725 = vmatpush.msra.mxu0 0.0
        %726 = vmatpush.msra.mxu0 0.0
        %727 = vmatpush.msra.mxu0 0.0
        %728 = vmatpush.msra.mxu0 0.0
        %729 = vmatpush.msra.mxu0 0.0
        %730 = vmatpush.msra.mxu0 0.0
        %731 = vmatpush.msra.mxu0 0.0
        %732 = vmatpush.msra.mxu0 0.0
        %733 = vmatpush.msra.mxu0 0.0
        %734 = vmatpush.msra.mxu0 0.0
        %735 = vmatpush.msra.mxu0 0.0
        %736 = vmatpush.msra.mxu0 0.0
        %737 = vmatpush.msra.mxu0 %v720
        %738 = vmatmul.f32.gmra.mxu0 %v708
        %v739 = vpop.f32.mrf.mxu0
        %v740 = vadd.f32 0.0, %v739
        %741 = vmatmul.f32.gmra.mxu0 %v711
        %v742 = vpop.f32.mrf.mxu0
        %v743 = vadd.f32 0.0, %v742
        %744 = vmatmul.f32.gmra.mxu0 %v714
        %v745 = vpop.f32.mrf.mxu0
        %v746 = vadd.f32 0.0, %v745
        %747 = vmatmul.f32.gmra.mxu0 %v717
        %v748 = vpop.f32.mrf.mxu0
        %v749 = vadd.f32 0.0, %v748
        %750 = vdwg.mxu0
        %v752 = vsel %vm674, %v617, 0
        %754 = vmatpush.msra.mxu0 0.0
        %755 = vmatpush.msra.mxu0 0.0
        %756 = vmatpush.msra.mxu0 0.0
        %757 = vmatpush.msra.mxu0 0.0
        %758 = vmatpush.msra.mxu0 0.0
        %759 = vmatpush.msra.mxu0 0.0
        %760 = vmatpush.msra.mxu0 0.0
        %761 = vmatpush.msra.mxu0 0.0
        %762 = vmatpush.msra.mxu0 0.0
        %763 = vmatpush.msra.mxu0 0.0
        %764 = vmatpush.msra.mxu0 0.0
        %765 = vmatpush.msra.mxu0 0.0
        %766 = vmatpush.msra.mxu0 0.0
        %767 = vmatpush.msra.mxu0 0.0
        %768 = vmatpush.msra.mxu0 0.0
        %769 = vmatpush.msra.mxu0 %v752
        %770 = vmatmul.f32.gmra.mxu0 %v663
        %v771 = vpop.f32.mrf.mxu0
        %v772 = vadd.f32 0.0, %v771
        %773 = vmatmul.f32.gmra.mxu0 %v666
        %v774 = vpop.f32.mrf.mxu0
        %v775 = vadd.f32 0.0, %v774
        %776 = vmatmul.f32.gmra.mxu0 %v669
        %v777 = vpop.f32.mrf.mxu0
        %v778 = vadd.f32 0.0, %v777
        %779 = vmatmul.f32.gmra.mxu0 %v672
        %v780 = vpop.f32.mrf.mxu0
        %v781 = vadd.f32 0.0, %v780
        %782 = vdwg.mxu0
        %v784 = vsel %vm674, %v637, 0
        %786 = vmatpush.msra.mxu0 0.0
        %787 = vmatpush.msra.mxu0 0.0
        %788 = vmatpush.msra.mxu0 0.0
        %789 = vmatpush.msra.mxu0 0.0
        %790 = vmatpush.msra.mxu0 0.0
        %791 = vmatpush.msra.mxu0 0.0
        %792 = vmatpush.msra.mxu0 0.0
        %793 = vmatpush.msra.mxu0 0.0
        %794 = vmatpush.msra.mxu0 0.0
        %795 = vmatpush.msra.mxu0 0.0
        %796 = vmatpush.msra.mxu0 0.0
        %797 = vmatpush.msra.mxu0 0.0
        %798 = vmatpush.msra.mxu0 0.0
        %799 = vmatpush.msra.mxu0 0.0
        %800 = vmatpush.msra.mxu0 0.0
        %801 = vmatpush.msra.mxu0 %v784
        %802 = vmatmul.f32.gmra.mxu0 %v663
        %v803 = vpop.f32.mrf.mxu0
        %v804 = vadd.f32 0.0, %v803
        %805 = vmatmul.f32.gmra.mxu0 %v666
        %v806 = vpop.f32.mrf.mxu0
        %v807 = vadd.f32 0.0, %v806
        %808 = vmatmul.f32.gmra.mxu0 %v669
        %v809 = vpop.f32.mrf.mxu0
        %v810 = vadd.f32 0.0, %v809
        %811 = vmatmul.f32.gmra.mxu0 %v672
        %v812 = vpop.f32.mrf.mxu0
        %v813 = vadd.f32 0.0, %v812
        %814 = vdwg.mxu0
        %v815 = vmul.f32 %v740, %v772
        %v816 = vmul.f32 %v743, %v775
        %v817 = vmul.f32 %v746, %v778
        %v818 = vmul.f32 %v749, %v781
        %v820 = vsel %vm525, %v815, 0
        %v823 = vsel %vm525, %v816, 0
        %v826 = vsel %vm525, %v817, 0
        %v829 = vsel %vm525, %v818, 0
        %831 = vmatpush.msra.mxu0 0.0
        %832 = vmatpush.msra.mxu0 0.0
        %833 = vmatpush.msra.mxu0 0.0
        %834 = vmatpush.msra.mxu0 0.0
        %835 = vmatpush.msra.mxu0 0.0
        %836 = vmatpush.msra.mxu0 0.0
        %837 = vmatpush.msra.mxu0 %v311
        %838 = vmatpush.msra.mxu0 %v310
        %839 = vmatpush.msra.mxu0 %v309
        %840 = vmatpush.msra.mxu0 %v308
        %841 = vmatpush.msra.mxu0 %v307
        %842 = vmatpush.msra.mxu0 %v306
        %843 = vmatpush.msra.mxu0 %v305
        %844 = vmatpush.msra.mxu0 %v304
        %845 = vmatpush.msra.mxu0 %v303
        %846 = vmatpush.msra.mxu0 %v302
        %847 = vmatmul.f32.gmra.mxu0 %v820
        %v848 = vpop.f32.mrf.mxu0
        %v849 = vadd.f32 0.0, %v848
        %850 = vmatmul.f32.gmra.mxu0 %v823
        %v851 = vpop.f32.mrf.mxu0
        %v852 = vadd.f32 0.0, %v851
        %853 = vmatmul.f32.gmra.mxu0 %v826
        %v854 = vpop.f32.mrf.mxu0
        %v855 = vadd.f32 0.0, %v854
        %856 = vmatmul.f32.gmra.mxu0 %v829
        %v857 = vpop.f32.mrf.mxu0
        %v858 = vadd.f32 0.0, %v857
        %859 = vdwg.mxu0
        %v860 = vmul.f32 %v849, 0.5
        %v861 = vmul.f32 %v852, 0.5
        %v862 = vmul.f32 %v855, 0.5
        %v863 = vmul.f32 %v858, 0.5
        %v864 = vmul.f32 %v860, 1.442695
        %v865 = vpow.pop %v864
        %v866 = vmul.f32 %v861, 1.442695
        %v867 = vpow.pop %v866
        %v868 = vmul.f32 %v862, 1.442695
        %v869 = vpow.pop %v868
        %v870 = vmul.f32 %v863, 1.442695
        %v871 = vpow.pop %v870
        %873 = vset.pattern.permute.xlu0 0
        %874 = vperm.xlu0 %873, %v696
        %v875 = vpop.permute.xlu0 %874
        %878 = vset.pattern.permute.xlu0 0
        %879 = vperm.xlu0 %878, %v699
        %v880 = vpop.permute.xlu0 %879
        %883 = vset.pattern.permute.xlu0 0
        %884 = vperm.xlu0 %883, %v702
        %v885 = vpop.permute.xlu0 %884
        %888 = vset.pattern.permute.xlu0 0
        %889 = vperm.xlu0 %888, %v705
        %v890 = vpop.permute.xlu0 %889
        %v892 = vmul.f32 %v865, %v875
        %v893 = vmul.f32 %v867, %v880
        %v894 = vmul.f32 %v869, %v885
        %v895 = vmul.f32 %v871, %v890
        %vm896 = vcmask 203776
        %v898 = vsel %vm896, %v412, 0
        %vm900 = vcmask 1040384
        %v902 = vsel %vm900, %v895, 0
        %904 = vmatpush.msra.mxu0 0.0
        %905 = vmatpush.msra.mxu0 0.0
        %906 = vmatpush.msra.mxu0 0.0
        %907 = vmatpush.msra.mxu0 0.0
        %908 = vmatpush.msra.mxu0 0.0
        %909 = vmatpush.msra.mxu0 0.0
        %910 = vmatpush.msra.mxu0 0.0
        %911 = vmatpush.msra.mxu0 0.0
        %912 = vmatpush.msra.mxu0 0.0
        %913 = vmatpush.msra.mxu0 0.0
        %914 = vmatpush.msra.mxu0 0.0
        %915 = vmatpush.msra.mxu0 0.0
        %916 = vmatpush.msra.mxu0 %v902
        %917 = vmatpush.msra.mxu0 %v894
        %918 = vmatpush.msra.mxu0 %v893
        %919 = vmatpush.msra.mxu0 %v892
        %920 = vmatmul.f32.gmra.mxu0 %v898
        %v921 = vpop.f32.mrf.mxu0
        %v922 = vadd.f32 1e-08, %v921
        %923 = vdwg.mxu0
        %v924 = vrcp.pop %v922
        %v926 = vsel %vm674, %v924, 0
        %928 = vmatpush.msra.mxu0 0.0
        %929 = vmatpush.msra.mxu0 0.0
        %930 = vmatpush.msra.mxu0 0.0
        %931 = vmatpush.msra.mxu0 0.0
        %932 = vmatpush.msra.mxu0 0.0
        %933 = vmatpush.msra.mxu0 0.0
        %934 = vmatpush.msra.mxu0 0.0
        %935 = vmatpush.msra.mxu0 0.0
        %936 = vmatpush.msra.mxu0 0.0
        %937 = vmatpush.msra.mxu0 0.0
        %938 = vmatpush.msra.mxu0 0.0
        %939 = vmatpush.msra.mxu0 0.0
        %940 = vmatpush.msra.mxu0 0.0
        %941 = vmatpush.msra.mxu0 0.0
        %942 = vmatpush.msra.mxu0 0.0
        %943 = vmatpush.msra.mxu0 %v926
        %944 = vmatmul.f32.gmra.mxu0 %v708
        %v945 = vpop.f32.mrf.mxu0
        %v946 = vadd.f32 0.0, %v945
        %947 = vmatmul.f32.gmra.mxu0 %v711
        %v948 = vpop.f32.mrf.mxu0
        %v949 = vadd.f32 0.0, %v948
        %950 = vmatmul.f32.gmra.mxu0 %v714
        %v951 = vpop.f32.mrf.mxu0
        %v952 = vadd.f32 0.0, %v951
        %953 = vmatmul.f32.gmra.mxu0 %v717
        %v954 = vpop.f32.mrf.mxu0
        %v955 = vadd.f32 0.0, %v954
        %956 = vdwg.mxu0
        %v957 = vmul.f32 %v892, %v946
        %v958 = vmul.f32 %v893, %v949
        %v959 = vmul.f32 %v894, %v952
        %v960 = vmul.f32 %v895, %v955
        %vm961 = vcmask 162816
        %v963 = vsel %vm961, %v957, 0
        %v966 = vsel %vm961, %v958, 0
        %v969 = vsel %vm961, %v959, 0
        %v972 = vsel %vm961, %v960, 0
        %vm974 = vcmask 1043456
        %v976 = vsel %vm974, %v335, 0
        %978 = vmatpush.msra.mxu0 0.0
        %979 = vmatpush.msra.mxu0 0.0
        %980 = vmatpush.msra.mxu0 0.0
        %981 = vmatpush.msra.mxu0 0.0
        %982 = vmatpush.msra.mxu0 0.0
        %983 = vmatpush.msra.mxu0 0.0
        %984 = vmatpush.msra.mxu0 0.0
        %985 = vmatpush.msra.mxu0 0.0
        %986 = vmatpush.msra.mxu0 0.0
        %987 = vmatpush.msra.mxu0 0.0
        %988 = vmatpush.msra.mxu0 0.0
        %989 = vmatpush.msra.mxu0 0.0
        %990 = vmatpush.msra.mxu0 0.0
        %991 = vmatpush.msra.mxu0 %v976
        %992 = vmatpush.msra.mxu0 %v334
        %993 = vmatpush.msra.mxu0 %v333
        %994 = vmatmul.f32.gmra.mxu0 %v963
        %v995 = vpop.f32.mrf.mxu0
        %v996 = vadd.f32 0.0, %v995
        %997 = vmatmul.f32.gmra.mxu0 %v966
        %v998 = vpop.f32.mrf.mxu0
        %v999 = vadd.f32 0.0, %v998
        %1000 = vmatmul.f32.gmra.mxu0 %v969
        %v1001 = vpop.f32.mrf.mxu0
        %v1002 = vadd.f32 0.0, %v1001
        %1003 = vmatmul.f32.gmra.mxu0 %v972
        %v1004 = vpop.f32.mrf.mxu0
        %v1005 = vadd.f32 0.0, %v1004
        %1006 = vdwg.mxu0
        %v1007 = vmul.f32 %v996, %v804
        %v1008 = vmul.f32 %v999, %v807
        %v1009 = vmul.f32 %v1002, %v810
        %v1010 = vmul.f32 %v1005, %v813
        %v1012 = vsel %vm900, %v1010, 0
        %1014 = vmatpush.msra.mxu0 0.0
        %1015 = vmatpush.msra.mxu0 0.0
        %1016 = vmatpush.msra.mxu0 0.0
        %1017 = vmatpush.msra.mxu0 0.0
        %1018 = vmatpush.msra.mxu0 0.0
        %1019 = vmatpush.msra.mxu0 0.0
        %1020 = vmatpush.msra.mxu0 0.0
        %1021 = vmatpush.msra.mxu0 0.0
        %1022 = vmatpush.msra.mxu0 0.0
        %1023 = vmatpush.msra.mxu0 0.0
        %1024 = vmatpush.msra.mxu0 0.0
        %1025 = vmatpush.msra.mxu0 0.0
        %1026 = vmatpush.msra.mxu0 %v1012
        %1027 = vmatpush.msra.mxu0 %v1009
        %1028 = vmatpush.msra.mxu0 %v1008
        %1029 = vmatpush.msra.mxu0 %v1007
        %1030 = vmatmul.f32.gmra.mxu0 %v898
        %v1031 = vpop.f32.mrf.mxu0
        %v1032 = vadd.f32 %v515, %v1031
        %1033 = vdwg.mxu0
        %vm1034 = vcmask 651264
        %v1035 = vsel %vm1034, %v1032, 0.0
        %1036 = vadd.xlane.f32.xlu0 %v1035
        %v1037 = vpop.xlane.xlu0 %1036
        %v1038 = vrcp.pop 80.0
        %v1039 = vmul.f32 80.0, %v1038
        %v1040 = vsub.f32 1.0, %v1039
        %v1041 = vmul.f32 %v1038, %v1040
        %v1042 = vadd.f32 %v1038, %v1041
        %vm1043 = vweird.f32 %v1038
        %v1044 = vsel %vm1043, %v1038, %v1042
        %v1045 = vmul.f32 %v1037, %v1044
        %v1046 = vsub.f32 %v1032, %v1045
        %v1047 = vmul.f32 %v1046, %v1046
        %v1048 = vsel %vm1034, %v1047, 0.0
        %1049 = vadd.xlane.f32.xlu0 %v1048
        %v1050 = vpop.xlane.xlu0 %1049
        %v1051 = vmul.f32 %v1050, %v1044
        %v1052 = vadd.f32 %v1051, 1e-05
        %v1053 = vrsqrt.pop %v1052
        %v1054 = vmul.f32 %v1053, %v1052
        %v1055 = vmul.f32 %v1054, %v1053
        %v1056 = vmul.f32 0.5, %v1055
        %v1057 = vsub.f32 1.5, %v1056
        %v1058 = vmul.f32 %v1053, %v1057
        %vm1059 = vweird.f32 %v1052
        %vm1060 = vweird.f32 %v1053
        %vm1061 = vmor %vm1059, %vm1060
        %v1062 = vsel %vm1061, %v1053, %v1058
        %v1063 = vmul.f32 %v1046, %v1062
        %v1064 = vmul.f32 %v1063, %v503
        %v1065 = vadd.f32 %v1064, %v504
        %v1067 = vsel %vm674, %v657, 0
        %1069 = vmatpush.msra.mxu0 0.0
        %1070 = vmatpush.msra.mxu0 0.0
        %1071 = vmatpush.msra.mxu0 0.0
        %1072 = vmatpush.msra.mxu0 0.0
        %1073 = vmatpush.msra.mxu0 0.0
        %1074 = vmatpush.msra.mxu0 0.0
        %1075 = vmatpush.msra.mxu0 0.0
        %1076 = vmatpush.msra.mxu0 0.0
        %1077 = vmatpush.msra.mxu0 0.0
        %1078 = vmatpush.msra.mxu0 0.0
        %1079 = vmatpush.msra.mxu0 0.0
        %1080 = vmatpush.msra.mxu0 0.0
        %1081 = vmatpush.msra.mxu0 0.0
        %1082 = vmatpush.msra.mxu0 0.0
        %1083 = vmatpush.msra.mxu0 0.0
        %1084 = vmatpush.msra.mxu0 %v1067
        %1085 = vmatmul.f32.gmra.mxu0 %v708
        %v1086 = vpop.f32.mrf.mxu0
        %v1087 = vadd.f32 0.0, %v1086
        %1088 = vmatmul.f32.gmra.mxu0 %v711
        %v1089 = vpop.f32.mrf.mxu0
        %v1090 = vadd.f32 0.0, %v1089
        %1091 = vmatmul.f32.gmra.mxu0 %v714
        %v1092 = vpop.f32.mrf.mxu0
        %v1093 = vadd.f32 0.0, %v1092
        %1094 = vmatmul.f32.gmra.mxu0 %v717
        %v1095 = vpop.f32.mrf.mxu0
        %v1096 = vadd.f32 0.0, %v1095
        %1097 = vdwg.mxu0
        %v1099 = vsel %vm674, %v567, 0
        %1101 = vmatpush.msra.mxu0 0.0
        %1102 = vmatpush.msra.mxu0 0.0
        %1103 = vmatpush.msra.mxu0 0.0
        %1104 = vmatpush.msra.mxu0 0.0
        %1105 = vmatpush.msra.mxu0 0.0
        %1106 = vmatpush.msra.mxu0 0.0
        %1107 = vmatpush.msra.mxu0 0.0
        %1108 = vmatpush.msra.mxu0 0.0
        %1109 = vmatpush.msra.mxu0 0.0
        %1110 = vmatpush.msra.mxu0 0.0
        %1111 = vmatpush.msra.mxu0 0.0
        %1112 = vmatpush.msra.mxu0 0.0
        %1113 = vmatpush.msra.mxu0 0.0
        %1114 = vmatpush.msra.mxu0 0.0
        %1115 = vmatpush.msra.mxu0 0.0
        %1116 = vmatpush.msra.mxu0 %v1099
        %1117 = vmatmul.f32.gmra.mxu0 %v663
        %v1118 = vpop.f32.mrf.mxu0
        %v1119 = vadd.f32 0.0, %v1118
        %1120 = vmatmul.f32.gmra.mxu0 %v666
        %v1121 = vpop.f32.mrf.mxu0
        %v1122 = vadd.f32 0.0, %v1121
        %1123 = vmatmul.f32.gmra.mxu0 %v669
        %v1124 = vpop.f32.mrf.mxu0
        %v1125 = vadd.f32 0.0, %v1124
        %1126 = vmatmul.f32.gmra.mxu0 %v672
        %v1127 = vpop.f32.mrf.mxu0
        %v1128 = vadd.f32 0.0, %v1127
        %1129 = vdwg.mxu0
        %v1131 = vsel %vm674, %v587, 0
        %1133 = vmatpush.msra.mxu0 0.0
        %1134 = vmatpush.msra.mxu0 0.0
        %1135 = vmatpush.msra.mxu0 0.0
        %1136 = vmatpush.msra.mxu0 0.0
        %1137 = vmatpush.msra.mxu0 0.0
        %1138 = vmatpush.msra.mxu0 0.0
        %1139 = vmatpush.msra.mxu0 0.0
        %1140 = vmatpush.msra.mxu0 0.0
        %1141 = vmatpush.msra.mxu0 0.0
        %1142 = vmatpush.msra.mxu0 0.0
        %1143 = vmatpush.msra.mxu0 0.0
        %1144 = vmatpush.msra.mxu0 0.0
        %1145 = vmatpush.msra.mxu0 0.0
        %1146 = vmatpush.msra.mxu0 0.0
        %1147 = vmatpush.msra.mxu0 0.0
        %1148 = vmatpush.msra.mxu0 %v1131
        %1149 = vmatmul.f32.gmra.mxu0 %v663
        %v1150 = vpop.f32.mrf.mxu0
        %v1151 = vadd.f32 0.0, %v1150
        %1152 = vmatmul.f32.gmra.mxu0 %v666
        %v1153 = vpop.f32.mrf.mxu0
        %v1154 = vadd.f32 0.0, %v1153
        %1155 = vmatmul.f32.gmra.mxu0 %v669
        %v1156 = vpop.f32.mrf.mxu0
        %v1157 = vadd.f32 0.0, %v1156
        %1158 = vmatmul.f32.gmra.mxu0 %v672
        %v1159 = vpop.f32.mrf.mxu0
        %v1160 = vadd.f32 0.0, %v1159
        %1161 = vdwg.mxu0
        %v1162 = vmul.f32 %v1087, %v1119
        %v1163 = vmul.f32 %v1090, %v1122
        %v1164 = vmul.f32 %v1093, %v1125
        %v1165 = vmul.f32 %v1096, %v1128
        %v1167 = vsel %vm525, %v1162, 0
        %v1170 = vsel %vm525, %v1163, 0
        %v1173 = vsel %vm525, %v1164, 0
        %v1176 = vsel %vm525, %v1165, 0
        %1178 = vmatpush.msra.mxu0 0.0
        %1179 = vmatpush.msra.mxu0 0.0
        %1180 = vmatpush.msra.mxu0 0.0
        %1181 = vmatpush.msra.mxu0 0.0
        %1182 = vmatpush.msra.mxu0 0.0
        %1183 = vmatpush.msra.mxu0 0.0
        %1184 = vmatpush.msra.mxu0 %v311
        %1185 = vmatpush.msra.mxu0 %v310
        %1186 = vmatpush.msra.mxu0 %v309
        %1187 = vmatpush.msra.mxu0 %v308
        %1188 = vmatpush.msra.mxu0 %v307
        %1189 = vmatpush.msra.mxu0 %v306
        %1190 = vmatpush.msra.mxu0 %v305
        %1191 = vmatpush.msra.mxu0 %v304
        %1192 = vmatpush.msra.mxu0 %v303
        %1193 = vmatpush.msra.mxu0 %v302
        %1194 = vmatmul.f32.gmra.mxu0 %v1167
        %v1195 = vpop.f32.mrf.mxu0
        %v1196 = vadd.f32 0.0, %v1195
        %1197 = vmatmul.f32.gmra.mxu0 %v1170
        %v1198 = vpop.f32.mrf.mxu0
        %v1199 = vadd.f32 0.0, %v1198
        %1200 = vmatmul.f32.gmra.mxu0 %v1173
        %v1201 = vpop.f32.mrf.mxu0
        %v1202 = vadd.f32 0.0, %v1201
        %1203 = vmatmul.f32.gmra.mxu0 %v1176
        %v1204 = vpop.f32.mrf.mxu0
        %v1205 = vadd.f32 0.0, %v1204
        %1206 = vdwg.mxu0
        %v1207 = vmul.f32 %v1196, 0.5
        %v1208 = vmul.f32 %v1199, 0.5
        %v1209 = vmul.f32 %v1202, 0.5
        %v1210 = vmul.f32 %v1205, 0.5
        %v1211 = vmul.f32 %v1207, 1.442695
        %v1212 = vpow.pop %v1211
        %v1213 = vmul.f32 %v1208, 1.442695
        %v1214 = vpow.pop %v1213
        %v1215 = vmul.f32 %v1209, 1.442695
        %v1216 = vpow.pop %v1215
        %v1217 = vmul.f32 %v1210, 1.442695
        %v1218 = vpow.pop %v1217
        %v1219 = vmul.f32 %v1212, %v875
        %v1220 = vmul.f32 %v1214, %v880
        %v1221 = vmul.f32 %v1216, %v885
        %v1222 = vmul.f32 %v1218, %v890
        %v1224 = vsel %vm900, %v1222, 0
        %1226 = vmatpush.msra.mxu0 0.0
        %1227 = vmatpush.msra.mxu0 0.0
        %1228 = vmatpush.msra.mxu0 0.0
        %1229 = vmatpush.msra.mxu0 0.0
        %1230 = vmatpush.msra.mxu0 0.0
        %1231 = vmatpush.msra.mxu0 0.0
        %1232 = vmatpush.msra.mxu0 0.0
        %1233 = vmatpush.msra.mxu0 0.0
        %1234 = vmatpush.msra.mxu0 0.0
        %1235 = vmatpush.msra.mxu0 0.0
        %1236 = vmatpush.msra.mxu0 0.0
        %1237 = vmatpush.msra.mxu0 0.0
        %1238 = vmatpush.msra.mxu0 %v1224
        %1239 = vmatpush.msra.mxu0 %v1221
        %1240 = vmatpush.msra.mxu0 %v1220
        %1241 = vmatpush.msra.mxu0 %v1219
        %1242 = vmatmul.f32.gmra.mxu0 %v898
        %v1243 = vpop.f32.mrf.mxu0
        %v1244 = vadd.f32 1e-08, %v1243
        %1245 = vdwg.mxu0
        %v1246 = vrcp.pop %v1244
        %v1248 = vsel %vm674, %v1246, 0
        %1250 = vmatpush.msra.mxu0 0.0
        %1251 = vmatpush.msra.mxu0 0.0
        %1252 = vmatpush.msra.mxu0 0.0
        %1253 = vmatpush.msra.mxu0 0.0
        %1254 = vmatpush.msra.mxu0 0.0
        %1255 = vmatpush.msra.mxu0 0.0
        %1256 = vmatpush.msra.mxu0 0.0
        %1257 = vmatpush.msra.mxu0 0.0
        %1258 = vmatpush.msra.mxu0 0.0
        %1259 = vmatpush.msra.mxu0 0.0
        %1260 = vmatpush.msra.mxu0 0.0
        %1261 = vmatpush.msra.mxu0 0.0
        %1262 = vmatpush.msra.mxu0 0.0
        %1263 = vmatpush.msra.mxu0 0.0
        %1264 = vmatpush.msra.mxu0 0.0
        %1265 = vmatpush.msra.mxu0 %v1248
        %1266 = vmatmul.f32.gmra.mxu0 %v708
        %v1267 = vpop.f32.mrf.mxu0
        %v1268 = vadd.f32 0.0, %v1267
        %1269 = vmatmul.f32.gmra.mxu0 %v711
        %v1270 = vpop.f32.mrf.mxu0
        %v1271 = vadd.f32 0.0, %v1270
        %1272 = vmatmul.f32.gmra.mxu0 %v714
        %v1273 = vpop.f32.mrf.mxu0
        %v1274 = vadd.f32 0.0, %v1273
        %1275 = vmatmul.f32.gmra.mxu0 %v717
        %v1276 = vpop.f32.mrf.mxu0
        %v1277 = vadd.f32 0.0, %v1276
        %1278 = vdwg.mxu0
        %v1279 = vmul.f32 %v1219, %v1268
        %v1280 = vmul.f32 %v1220, %v1271
        %v1281 = vmul.f32 %v1221, %v1274
        %v1282 = vmul.f32 %v1222, %v1277
        %v1284 = vsel %vm961, %v1279, 0
        %v1287 = vsel %vm961, %v1280, 0
        %v1290 = vsel %vm961, %v1281, 0
        %v1293 = vsel %vm961, %v1282, 0
        %1295 = vmatpush.msra.mxu0 0.0
        %1296 = vmatpush.msra.mxu0 0.0
        %1297 = vmatpush.msra.mxu0 0.0
        %1298 = vmatpush.msra.mxu0 0.0
        %1299 = vmatpush.msra.mxu0 0.0
        %1300 = vmatpush.msra.mxu0 0.0
        %1301 = vmatpush.msra.mxu0 0.0
        %1302 = vmatpush.msra.mxu0 0.0
        %1303 = vmatpush.msra.mxu0 0.0
        %1304 = vmatpush.msra.mxu0 0.0
        %1305 = vmatpush.msra.mxu0 0.0
        %1306 = vmatpush.msra.mxu0 0.0
        %1307 = vmatpush.msra.mxu0 0.0
        %1308 = vmatpush.msra.mxu0 %v976
        %1309 = vmatpush.msra.mxu0 %v334
        %1310 = vmatpush.msra.mxu0 %v333
        %1311 = vmatmul.f32.gmra.mxu0 %v1284
        %v1312 = vpop.f32.mrf.mxu0
        %v1313 = vadd.f32 0.0, %v1312
        %1314 = vmatmul.f32.gmra.mxu0 %v1287
        %v1315 = vpop.f32.mrf.mxu0
        %v1316 = vadd.f32 0.0, %v1315
        %1317 = vmatmul.f32.gmra.mxu0 %v1290
        %v1318 = vpop.f32.mrf.mxu0
        %v1319 = vadd.f32 0.0, %v1318
        %1320 = vmatmul.f32.gmra.mxu0 %v1293
        %v1321 = vpop.f32.mrf.mxu0
        %v1322 = vadd.f32 0.0, %v1321
        %1323 = vdwg.mxu0
        %v1324 = vmul.f32 %v1313, %v1151
        %v1325 = vmul.f32 %v1316, %v1154
        %v1326 = vmul.f32 %v1319, %v1157
        %v1327 = vmul.f32 %v1322, %v1160
        %v1329 = vsel %vm900, %v1327, 0
        %1331 = vmatpush.msra.mxu0 0.0
        %1332 = vmatpush.msra.mxu0 0.0
        %1333 = vmatpush.msra.mxu0 0.0
        %1334 = vmatpush.msra.mxu0 0.0
        %1335 = vmatpush.msra.mxu0 0.0
        %1336 = vmatpush.msra.mxu0 0.0
        %1337 = vmatpush.msra.mxu0 0.0
        %1338 = vmatpush.msra.mxu0 0.0
        %1339 = vmatpush.msra.mxu0 0.0
        %1340 = vmatpush.msra.mxu0 0.0
        %1341 = vmatpush.msra.mxu0 0.0
        %1342 = vmatpush.msra.mxu0 0.0
        %1343 = vmatpush.msra.mxu0 %v1329
        %1344 = vmatpush.msra.mxu0 %v1326
        %1345 = vmatpush.msra.mxu0 %v1325
        %1346 = vmatpush.msra.mxu0 %v1324
        %1347 = vmatmul.f32.gmra.mxu0 %v898
        %v1348 = vpop.f32.mrf.mxu0
        %v1349 = vadd.f32 %v517, %v1348
        %1350 = vdwg.mxu0
        %v1351 = vsel %vm1034, %v1349, 0.0
        %1352 = vadd.xlane.f32.xlu0 %v1351
        %v1353 = vpop.xlane.xlu0 %1352
        %v1354 = vmul.f32 %v1353, %v1044
        %v1355 = vsub.f32 %v1349, %v1354
        %v1356 = vmul.f32 %v1355, %v1355
        %v1357 = vsel %vm1034, %v1356, 0.0
        %1358 = vadd.xlane.f32.xlu0 %v1357
        %v1359 = vpop.xlane.xlu0 %1358
        %v1360 = vmul.f32 %v1359, %v1044
        %v1361 = vadd.f32 %v1360, 1e-05
        %v1362 = vrsqrt.pop %v1361
        %v1363 = vmul.f32 %v1362, %v1361
        %v1364 = vmul.f32 %v1363, %v1362
        %v1365 = vmul.f32 0.5, %v1364
        %v1366 = vsub.f32 1.5, %v1365
        %v1367 = vmul.f32 %v1362, %v1366
        %vm1368 = vweird.f32 %v1361
        %vm1369 = vweird.f32 %v1362
        %vm1370 = vmor %vm1368, %vm1369
        %v1371 = vsel %vm1370, %v1362, %v1367
        %v1372 = vmul.f32 %v1355, %v1371
        %v1373 = vmul.f32 %v1372, %v503
        %v1374 = vadd.f32 %v1373, %v504
        %v1376 = vsel %vm525, %v1065, 0
        %1378 = vmatpush.msra.mxu0 0.0
        %1379 = vmatpush.msra.mxu0 0.0
        %1380 = vmatpush.msra.mxu0 0.0
        %1381 = vmatpush.msra.mxu0 0.0
        %1382 = vmatpush.msra.mxu0 0.0
        %1383 = vmatpush.msra.mxu0 0.0
        %1384 = vmatpush.msra.mxu0 %v488
        %1385 = vmatpush.msra.mxu0 %v487
        %1386 = vmatpush.msra.mxu0 %v486
        %1387 = vmatpush.msra.mxu0 %v485
        %1388 = vmatpush.msra.mxu0 %v484
        %1389 = vmatpush.msra.mxu0 %v483
        %1390 = vmatpush.msra.mxu0 %v482
        %1391 = vmatpush.msra.mxu0 %v481
        %1392 = vmatpush.msra.mxu0 %v480
        %1393 = vmatpush.msra.mxu0 %v479
        %1394 = vmatmul.f32.gmra.mxu0 %v1376
        %v1395 = vpop.f32.mrf.mxu0
        %v1396 = vadd.f32 %v489, %v1395
        %1397 = vdwg.mxu0
        %v1398 = vtanh.pop %v1396
        %v1400 = vsel %vm525, %v1374, 0
        %1402 = vmatpush.msra.mxu0 0.0
        %1403 = vmatpush.msra.mxu0 0.0
        %1404 = vmatpush.msra.mxu0 0.0
        %1405 = vmatpush.msra.mxu0 0.0
        %1406 = vmatpush.msra.mxu0 0.0
        %1407 = vmatpush.msra.mxu0 0.0
        %1408 = vmatpush.msra.mxu0 %v500
        %1409 = vmatpush.msra.mxu0 %v499
        %1410 = vmatpush.msra.mxu0 %v498
        %1411 = vmatpush.msra.mxu0 %v497
        %1412 = vmatpush.msra.mxu0 %v496
        %1413 = vmatpush.msra.mxu0 %v495
        %1414 = vmatpush.msra.mxu0 %v494
        %1415 = vmatpush.msra.mxu0 %v493
        %1416 = vmatpush.msra.mxu0 %v492
        %1417 = vmatpush.msra.mxu0 %v491
        %1418 = vmatmul.f32.gmra.mxu0 %v1400
        %v1419 = vpop.f32.mrf.mxu0
        %v1420 = vadd.f32 %v501, %v1419
        %1421 = vdwg.mxu0
        %v1422 = vtanh.pop %v1420
        %v1423 = vmul.f32 %v1398, %v505
        %v1424 = vsel %vm1034, %v1423, 0.0
        %1425 = vadd.xlane.f32.xlu0 %v1424
        %v1426 = vpop.xlane.xlu0 %1425
        %v1427 = vstv %s511
        %v1428 = vadd.f32 %v1426, %v1427
        %v1429 = vmul.f32 %v1422, %v506
        %v1430 = vsel %vm1034, %v1429, 0.0
        %1431 = vadd.xlane.f32.xlu0 %v1430
        %v1432 = vpop.xlane.xlu0 %1431
        %v1433 = vstv %s512
        %v1434 = vadd.f32 %v1432, %v1433
        %v1435 = vld [vmem:[%s245] sm:$0x1f]
        %s1436 = scalar_lea.vmem %s245, 8
        %v1437 = vld [vmem:[%s1436] sm:$0x1f]
        %v1438 = vmul.f32 %v1435, %v509
        %v1439 = vsel %vm1034, %v1438, 0.0
        %1440 = vadd.xlane.f32.xlu0 %v1439
        %v1441 = vpop.xlane.xlu0 %1440
        %v1442 = vmul.f32 %v1437, %v510
        %v1443 = vsel %vm1034, %v1442, 0.0
        %1444 = vadd.xlane.f32.xlu0 %v1443
        %v1445 = vpop.xlane.xlu0 %1444
        %v1446 = vadd.f32 %v1441, %v1445
        %v1447 = vstv %s514
        %v1448 = vadd.f32 %v1446, %v1447
        %v1449 = vxor.u32 %v1448, 2147483648
        %v1450 = vmul.f32 %v1449, 1.442695
        %v1451 = vpow.pop %v1450
        %v1452 = vadd.f32 %v1451, 1.0
        %v1453 = vrcp.pop %v1452
        %v1454 = vmul.f32 %v1452, %v1453
        %v1455 = vsub.f32 1.0, %v1454
        %v1456 = vmul.f32 %v1453, %v1455
        %v1457 = vadd.f32 %v1453, %v1456
        %vm1458 = vweird.f32 %v1452
        %vm1459 = vweird.f32 %v1453
        %vm1460 = vmor %vm1458, %vm1459
        %v1461 = vsel %vm1460, %v1453, %v1457
        %v1462 = vand.u32 2147483647, %v1452
        %vm1463 = vcmp.eq.f32.partialorder %v1462, 8.507059e+37
        %v1464 = vand.u32 %v1452, 2147483648
        %v1465 = vor.u32 1.1754944e-38, %v1464
        %v1466 = vsel %vm1463, %v1465, %v1461
        %v1467 = vmul.f32 1.0, %v1466
        %v1468 = vmul.f32 %v1435, %v1467
        %v1469 = vsub.f32 1.0, %v1467
        %v1470 = vmul.f32 %v1437, %v1469
        %v1471 = vadd.f32 %v1468, %v1470
        %v1472 = vmul.f32 %v1428, 1.442695
        %v1473 = vpow.pop %v1472
        %v1474 = vmul.f32 %v1473, %v660
        %vm1475 = vcmask 4096
        %v1476 = vsel %vm1475, %v1474, 0.0
        %v1477 = vrot.slane %v1476, 4
        %v1478 = vadd.f32 %v1476, %v1477
        %v1479 = vrot.slane %v1478, 2
        %v1480 = vadd.f32 %v1478, %v1479
        %v1481 = vrot.slane %v1480, 1
        %v1482 = vadd.f32 %v1480, %v1481
        %v1483 = vadd.f32 %v1482, 1e-08
        %v1484 = vrcp.pop %v1483
        %v1485 = vmul.f32 %v1474, %v1484
        %1487 = vset.pattern.permute.xlu0 0
        %1488 = vperm.xlu0 %1487, %v1485
        %v1489 = vpop.permute.xlu0 %1488
        %v1491 = vmul.f32 %v1065, %v1489
        %v1492 = vsel %vm1034, %v1491, 0.0
        %v1493 = vrot.slane %v1492, 4
        %v1494 = vadd.f32 %v1492, %v1493
        %v1495 = vrot.slane %v1494, 2
        %v1496 = vadd.f32 %v1494, %v1495
        %v1497 = vrot.slane %v1496, 1
        %v1498 = vadd.f32 %v1496, %v1497
        %v1499 = vmul.f32 %v1434, 1.442695
        %v1500 = vpow.pop %v1499
        %v1501 = vmul.f32 %v1500, %v660
        %v1502 = vsel %vm1475, %v1501, 0.0
        %v1503 = vrot.slane %v1502, 4
        %v1504 = vadd.f32 %v1502, %v1503
        %v1505 = vrot.slane %v1504, 2
        %v1506 = vadd.f32 %v1504, %v1505
        %v1507 = vrot.slane %v1506, 1
        %v1508 = vadd.f32 %v1506, %v1507
        %v1509 = vadd.f32 %v1508, 1e-08
        %v1510 = vrcp.pop %v1509
        %v1511 = vmul.f32 %v1501, %v1510
        %1513 = vset.pattern.permute.xlu0 0
        %1514 = vperm.xlu0 %1513, %v1511
        %v1515 = vpop.permute.xlu0 %1514
        %v1517 = vmul.f32 %v1374, %v1515
        %v1518 = vsel %vm1034, %v1517, 0.0
        %v1519 = vrot.slane %v1518, 4
        %v1520 = vadd.f32 %v1518, %v1519
        %v1521 = vrot.slane %v1520, 2
        %v1522 = vadd.f32 %v1520, %v1521
        %v1523 = vrot.slane %v1522, 1
        %v1524 = vadd.f32 %v1522, %v1523
        %v1525 = vmul.f32 %v1498, %v507
        %v1526 = vsel %vm525, %v1525, 0.0
        %1527 = vadd.xlane.f32.xlu0 %v1526
        %v1528 = vpop.xlane.xlu0 %1527
        %v1529 = vmul.f32 %v1524, %v508
        %v1530 = vsel %vm525, %v1529, 0.0
        %1531 = vadd.xlane.f32.xlu0 %v1530
        %v1532 = vpop.xlane.xlu0 %1531
        %v1533 = vadd.f32 %v1528, %v1532
        %v1534 = vstv %s513
        %v1535 = vadd.f32 %v1533, %v1534
        %v1536 = vxor.u32 %v1535, 2147483648
        %v1537 = vmul.f32 %v1536, 1.442695
        %v1538 = vpow.pop %v1537
        %v1539 = vadd.f32 %v1538, 1.0
        %v1540 = vrcp.pop %v1539
        %v1541 = vmul.f32 %v1539, %v1540
        %v1542 = vsub.f32 1.0, %v1541
        %v1543 = vmul.f32 %v1540, %v1542
        %v1544 = vadd.f32 %v1540, %v1543
        %vm1545 = vweird.f32 %v1539
        %vm1546 = vweird.f32 %v1540
        %vm1547 = vmor %vm1545, %vm1546
        %v1548 = vsel %vm1547, %v1540, %v1544
        %v1549 = vand.u32 2147483647, %v1539
        %vm1550 = vcmp.eq.f32.partialorder %v1549, 8.507059e+37
        %v1551 = vand.u32 %v1539, 2147483648
        %v1552 = vor.u32 1.1754944e-38, %v1551
        %v1553 = vsel %vm1550, %v1552, %v1548
        %v1554 = vmul.f32 1.0, %v1553
        %v1555 = vmul.f32 %v1554, %v1498
        %v1556 = vsub.f32 1.0, %v1554
        %v1557 = vmul.f32 %v1556, %v1524
        %v1558 = vadd.f32 %v1555, %v1557
        %v1560 = vsel %vm525, %v1558, 0
        %v1563 = vsel %vm525, %v1471, 0
        %1565 = vmatpush.xpose.msra.mxu0 0.0
        %1566 = vmatpush.xpose.msra.mxu0 0.0
        %1567 = vmatpush.xpose.msra.mxu0 0.0
        %1568 = vmatpush.xpose.msra.mxu0 0.0
        %1569 = vmatpush.xpose.msra.mxu0 0.0
        %1570 = vmatpush.xpose.msra.mxu0 0.0
        %1571 = vmatpush.xpose.msra.mxu0 0.0
        %1572 = vmatpush.xpose.msra.mxu0 0.0
        %1573 = vmatpush.xpose.msra.mxu0 0.0
        %1574 = vmatpush.xpose.msra.mxu0 0.0
        %1575 = vmatpush.xpose.msra.mxu0 0.0
        %1576 = vmatpush.xpose.msra.mxu0 0.0
        %1577 = vmatpush.xpose.msra.mxu0 0.0
        %1578 = vmatpush.xpose.msra.mxu0 0.0
        %1579 = vmatpush.xpose.msra.mxu0 0.0
        %1580 = vmatpush.xpose.msra.mxu0 %v1563
        %1581 = vmatmul.f32.gmra.mxu0 %v1560
        %v1582 = vpop.f32.mrf.mxu0
        %v1583 = vadd.f32 0.0, %v1582
        %1584 = vdwg.mxu0
        %vm1585 = vcmask 32768
        %1586 = vst.msk [vmem:[%s235] sm:$0x1] %vm1585, %v1583
        %s1587 = sand.u32 %s122, 1
        %s1588 = scalar_lea.sflag [#allocation4], %s1587
        %s1589 = sand.u32 %s122, 1
        %s1590 = scalar_lea.vmem [#allocation7], %s1589
        // Predicated region
        $region45: #{tpu_custom_call.1} parent=35 // pred_check
          %p1591 = pneg %p132
        $region46: #{tpu_custom_call.1} parent=35 // pred_check_branch
          %1593 = sbr.rel (%p1591) target = $region48
        $region47: #{tpu_custom_call.1} parent=35 // pred_region
          %1595 = vsyncadd %s1588, 0
          %s1596 = scalar_lea.hbm %s4, %s20
          %s1598 = sshll.u32 %s1590, 4
          %s1599 = int_to_ptr.vmem [resolvable:$true] %s1598
          %s1600 = sshll.u32 %s1596, 4
          %s1601 = int_to_ptr.hbm [resolvable:$true] %s1600
          %1603 = dma.vmem_to_hbm [thread:$0]  %s1599, 16, %s1601, %s1588
        $region48: #{tpu_custom_call.1} parent=35 // pred_fallthru
          _
      $region36: #{tpu_custom_call.1} parent=5 // pred_fallthru
        _
      %p1604 = scmp.le.s32.totalorder 2, %s15
      // Predicated region
      $region49: #{tpu_custom_call.1} parent=5 // pred_check
        %p1605 = pneg %p1604
      $region50: #{tpu_custom_call.1} parent=5 // pred_check_branch
        %1607 = sbr.rel (%p1605) target = $region52
      $region51: #{tpu_custom_call.1} parent=5 // pred_region
        %s1608 = ssub.s32 %s15, 2
        // Predicated region
        $region53: #{tpu_custom_call.1} parent=51 // pred_check
          %p1609 = pneg %p138
        $region54: #{tpu_custom_call.1} parent=51 // pred_check_branch
          %1611 = sbr.rel (%p1609) target = $region56
        $region55: #{tpu_custom_call.1} parent=51 // pred_region
          %s1612 = sand.u32 %s123, 1
          %s1613 = scalar_lea.sflag [#allocation4], %s1612
          %s1614 = sand.u32 %s123, 1
          %s1615 = scalar_lea.vmem [#allocation7], %s1614
          %1617 = dma.done %s1613, 16
        $region56: #{tpu_custom_call.1} parent=51 // pred_fallthru
          _
      $region52: #{tpu_custom_call.1} parent=5 // pred_fallthru
        _
    $region6: #{tpu_custom_call.1} parent=1 // loop_footer
      %s19 = sadd.s32 1, %s15
    $region7: #{tpu_custom_call.1} parent=1 // loop_footer_branch
      %14 = sbr.rel target = $region3
    $region8: #{tpu_custom_call.1} parent=1 // loop_exit
      _
    %1618 = vsyncpa [#allocation3], 1
    %s1619 = scalar_lea.sflag [#allocation3], 1
    %1620 = vsyncpa %s1619, 1
    %1621 = vsyncpa [#allocation4], 1
    %s1622 = scalar_lea.sflag [#allocation4], 1
    %1623 = vsyncpa %s1622, 1
    %1624 = vsyncpa [#allocation5], 1
    %s1625 = scalar_lea.sflag [#allocation5], 1
    %1626 = vsyncpa %s1625, 1

</llo_original>
